<compile_context>
chip_gen: v6e
topology: v6e:2x2x1
jax: 0.10.0
libtpu: 0.0.40
codegen_flags: <defaults>
</compile_context>

<pallas_src>
import functools

import jax
import jax.numpy as jnp
from jax.experimental import pallas as pl
from jax.experimental.pallas import tpu as pltpu


# --------------------------------------------------------------------------- #
# Pallas kernel: whole residual block for one batch element
# --------------------------------------------------------------------------- #
def _residual_block_kernel(xa_ref, w1_ref, s1_ref, b1_ref,
                           w2_ref, s2_ref, b2_ref,
                           wd_ref, sd_ref, bd_ref,
                           out_ref, lhs2_ref,
                           *, Ho, Wo, Cout_p, tap_rows, ident_row):
    M = Ho * Wo
    f32 = jnp.float32
    bf16 = jnp.bfloat16

    def lrelu(v):
        return jnp.maximum(v, jnp.float32(0.01) * v)

    # ---- conv1: 3x3 (stride folded away by the wrapper) as 3 MXU matmuls --------
    # dx and Cin are pre-folded into the lane dim, so every dy tap's lhs is an
    # aligned row-offset view of the resident x block (no relayout, no copy).
    lhs = xa_ref[0, tap_rows[0]:tap_rows[0] + M, :]
    acc1 = jnp.dot(lhs, w1_ref[0], preferred_element_type=f32)
    for dy in (1, 2):
        lhs = xa_ref[0, tap_rows[dy]:tap_rows[dy] + M, :]
        acc1 = acc1 + jnp.dot(lhs, w1_ref[dy], preferred_element_type=f32)

    out1 = lrelu(acc1 * s1_ref[...] + b1_ref[...])            # (M, Cout_p) f32, folded BN1

    # ---- stage conv1 activations for conv2 --------------------------------------
    # lhs2[(r)*Wo + x, dx*C:(dx+1)*C] = out1_padded[r, x + dx]  (1 zero halo row top/bottom,
    # dx shift folded into lanes).  Stores below are row/lane aligned (Wo % 8 == 0,
    # Cout_p % 128 == 0); only the two x-shift builds cost a relayout, paid once.
    o1r = out1.reshape(Ho, Wo, Cout_p)
    zcol = jnp.zeros((Ho, 1, Cout_p), f32)
    left = jnp.concatenate([zcol, o1r[:, :Wo - 1, :]], axis=1).reshape(M, Cout_p)
    right = jnp.concatenate([o1r[:, 1:, :], zcol], axis=1).reshape(M, Cout_p)

    zrow = jnp.zeros((Wo, 3 * Cout_p), bf16)
    lhs2_ref[0:Wo, :] = zrow                                   # top halo row
    lhs2_ref[(Ho + 1) * Wo:(Ho + 2) * Wo, :] = zrow            # bottom halo row
    lhs2_ref[Wo:Wo + M, 0:Cout_p] = left.astype(bf16)
    lhs2_ref[Wo:Wo + M, Cout_p:2 * Cout_p] = out1.astype(bf16)
    lhs2_ref[Wo:Wo + M, 2 * Cout_p:3 * Cout_p] = right.astype(bf16)

    # ---- conv2: 3x3 stride-1 conv as 3 MXU matmuls over aligned row views -------
    acc2 = jnp.dot(lhs2_ref[0:M, :], w2_ref[0], preferred_element_type=f32)
    for dy in (1, 2):
        acc2 = acc2 + jnp.dot(lhs2_ref[dy * Wo:dy * Wo + M, :], w2_ref[dy],
                              preferred_element_type=f32)
    out2 = acc2 * s2_ref[...] + b2_ref[...]                    # folded BN2

    # ---- shortcut: 1x1 conv (+BN) or identity, from the resident x block --------
    ident = jnp.dot(xa_ref[0, ident_row:ident_row + M, :], wd_ref[...],
                    preferred_element_type=f32)
    ident = ident * sd_ref[...] + bd_ref[...]

    out_ref[0] = lrelu(out2 + ident).astype(out_ref.dtype)


# --------------------------------------------------------------------------- #
# Parameter / layout plumbing (plain JAX)
# --------------------------------------------------------------------------- #
def _round_up(x, m):
    return ((x + m - 1) // m) * m


def _conv3x3_to_kfolded(w_oihw, cin_p, cout_p):
    """(Cout, Cin, 3, 3) -> (3_dy, 3_dx*cin_p, cout_p) bf16; K folds (dx, cin)."""
    cout, cin, _, _ = w_oihw.shape
    wt = jnp.transpose(w_oihw, (2, 3, 1, 0))                   # (dy, dx, cin, cout)
    wt = jnp.pad(wt, ((0, 0), (0, 0), (0, cin_p - cin), (0, cout_p - cout)))
    return wt.reshape(3, 3 * cin_p, cout_p).astype(jnp.bfloat16)


def _fold_bn(conv_bias, gamma, beta, mean, var, cout_pad, eps=1e-5):
    """BN(conv(x)+b) == conv(x)*scale + bias; zero-padded to cout_pad channels."""
    scale = gamma / jnp.sqrt(var + eps)
    bias = beta + scale * (conv_bias - mean)
    pad = cout_pad - scale.shape[0]
    scale = jnp.pad(scale, (0, pad)).reshape(1, cout_pad).astype(jnp.float32)
    bias = jnp.pad(bias, (0, pad)).reshape(1, cout_pad).astype(jnp.float32)
    return scale, bias


def residual_block_2d(x_nchw, params, in_channels, out_channels, downsample):
    stride = 2 if downsample else 1
    has_ds = downsample or (in_channels != out_channels)

    x = jnp.transpose(x_nchw, (0, 2, 3, 1)).astype(jnp.float32)      # NCHW -> NHWC
    N, H, W, Cin = x.shape
    Cout = out_channels
    Ho = (H + 2 - 3) // stride + 1
    Wo = (W + 2 - 3) // stride + 1
    if stride == 2 and (H % 2 or W % 2):
        raise ValueError("stride-2 path requires even H and W")
    if Wo % 8:
        # TODO(synk): generalize to output widths that are not multiples of 8.
        raise ValueError("this kernel requires the output width to be a multiple of 8")

    Cin_p = _round_up(Cin, 8)
    Cout_p = _round_up(Cout, 128)          # lane-dense output / MXU result columns
    M = Ho * Wo

    # ---- x layout: pad, (stride 2) split into phases, fold dx into lanes, bf16 ----
    xpad = jnp.pad(x, ((0, 0), (1, 1), (1, 1), (0, Cin_p - Cin))).astype(jnp.bfloat16)
    if stride == 1:
        # rows = padded image rows; lanes = (dx, cin)
        xa = jnp.concatenate([xpad[:, :, dx:dx + Wo, :] for dx in range(3)], axis=-1)
        n_rows = H + 2
        tap_rows = (0, Wo, 2 * Wo)         # flat row offset of conv1 tap dy = 0, 1, 2
        ident_row = Wo                     # shortcut reads x[y, x] via the center lane block
    else:
        Hh = (H + 2) // 2
        ph = xpad.reshape(N, Hh, 2, (W + 2) // 2, 2, Cin_p)

        def group(ry):                     # x-phase ry rows, dx folded into lanes
            return jnp.concatenate(
                [ph[:, :, ry, 0:Wo, 0, :],          # dx = 0 -> x-phase 0, offset 0
                 ph[:, :, ry, 0:Wo, 1, :],          # dx = 1 -> x-phase 1, offset 0
                 ph[:, :, ry, 1:Wo + 1, 0, :]],     # dx = 2 -> x-phase 0, offset 1
                axis=-1)

        xa = jnp.concatenate([group(0), group(1)], axis=1)    # (N, 2*Hh, Wo, 3*Cin_p)
        n_rows = 2 * Hh
        tap_rows = (0, Hh * Wo, Wo)        # dy=0 -> grp0+0, dy=1 -> grp1+0, dy=2 -> grp0+1
        ident_row = Hh * Wo                # shortcut reads x[2y, 2x] (grp1 center block)
    xa = xa.reshape(N, n_rows * Wo, 3 * Cin_p)

    # ---- weights / folded BN -----------------------------------------------------
    w1k = _conv3x3_to_kfolded(params["conv1_w"], Cin_p, Cout_p)      # (3, 3*Cin_p, Cout_p)
    w2k = _conv3x3_to_kfolded(params["conv2_w"], Cout_p, Cout_p)     # (3, 3*Cout_p, Cout_p)
    s1, b1 = _fold_bn(params["conv1_b"], params["bn1_gamma"], params["bn1_beta"],
                      params["bn1_mean"], params["bn1_var"], Cout_p)
    s2, b2 = _fold_bn(params["conv2_b"], params["bn2_gamma"], params["bn2_beta"],
                      params["bn2_mean"], params["bn2_var"], Cout_p)

    # shortcut weights live in the *center* dx lane block so the kernel reuses the
    # resident x block (no second HBM copy of x for the identity/downsample path).
    if has_ds:
        wd_core = params["ds_w"][:, :, 0, 0].T                        # (Cin, Cout)
        sd, bd = _fold_bn(params["ds_b"], params["bnd_gamma"], params["bnd_beta"],
                          params["bnd_mean"], params["bnd_var"], Cout_p)
    else:
        wd_core = jnp.eye(Cin, dtype=jnp.float32)                     # identity (Cin == Cout)
        sd = jnp.ones((1, Cout_p), jnp.float32)
        bd = jnp.zeros((1, Cout_p), jnp.float32)
    wd_core = jnp.pad(wd_core, ((0, Cin_p - wd_core.shape[0]),
                                (0, Cout_p - wd_core.shape[1])))
    wd = jnp.zeros((3 * Cin_p, Cout_p), jnp.float32)
    wd = wd.at[Cin_p:2 * Cin_p, :].set(wd_core).astype(jnp.bfloat16)

    kernel = functools.partial(_residual_block_kernel, Ho=Ho, Wo=Wo, Cout_p=Cout_p,
                               tap_rows=tap_rows, ident_row=ident_row)

    out = pl.pallas_call(
        kernel,
        out_shape=jax.ShapeDtypeStruct((N, M, Cout_p), jnp.bfloat16),
        grid=(N,),
        in_specs=[
            pl.BlockSpec((1, n_rows * Wo, 3 * Cin_p), lambda n: (n, 0, 0)),   # x (dx-folded)
            pl.BlockSpec((3, 3 * Cin_p, Cout_p), lambda n: (0, 0, 0)),        # conv1 weights
            pl.BlockSpec((1, Cout_p), lambda n: (0, 0)),                      # BN1 scale
            pl.BlockSpec((1, Cout_p), lambda n: (0, 0)),                      # BN1 bias
            pl.BlockSpec((3, 3 * Cout_p, Cout_p), lambda n: (0, 0, 0)),       # conv2 weights
            pl.BlockSpec((1, Cout_p), lambda n: (0, 0)),                      # BN2 scale
            pl.BlockSpec((1, Cout_p), lambda n: (0, 0)),                      # BN2 bias
            pl.BlockSpec((3 * Cin_p, Cout_p), lambda n: (0, 0)),              # shortcut weights
            pl.BlockSpec((1, Cout_p), lambda n: (0, 0)),                      # shortcut scale
            pl.BlockSpec((1, Cout_p), lambda n: (0, 0)),                      # shortcut bias
        ],
        out_specs=pl.BlockSpec((1, M, Cout_p), lambda n: (n, 0, 0)),
        scratch_shapes=[
            pltpu.VMEM(((Ho + 2) * Wo, 3 * Cout_p), jnp.bfloat16),   # staged conv1 acts
        ],
        compiler_params=pltpu.CompilerParams(
            dimension_semantics=("parallel",),
            vmem_limit_bytes=64 * 1024 * 1024),
    )(xa, w1k, s1, b1, w2k, s2, b2, wd, sd, bd)

    out = out.reshape(N, Ho, Wo, Cout_p)[:, :, :, :Cout].astype(jnp.float32)
    return jnp.transpose(out, (0, 3, 1, 2))                          # NHWC -> NCHW


# --------------------------------------------------------------------------- #
# Pure-JAX reference (for correctness check)
# --------------------------------------------------------------------------- #
def reference_forward(x, params, in_channels, out_channels, downsample):
    stride = 2 if downsample else 1

    def conv(x, w, b, stride, padding):
        y = jax.lax.conv_general_dilated(
            x, w, (stride, stride), [(padding, padding), (padding, padding)],
            dimension_numbers=("NCHW", "OIHW", "NCHW"))
        return y + b[None, :, None, None]

    def bn(x, g, bt, m, v, eps=1e-5):
        return (g[None, :, None, None] * (x - m[None, :, None, None])
                / jnp.sqrt(v[None, :, None, None] + eps) + bt[None, :, None, None])

    def lrelu(x):
        return jnp.where(x >= 0, x, 0.01 * x)

    out = lrelu(bn(conv(x, params["conv1_w"], params["conv1_b"], stride, 1),
                   params["bn1_gamma"], params["bn1_beta"],
                   params["bn1_mean"], params["bn1_var"]))
    out = bn(conv(out, params["conv2_w"], params["conv2_b"], 1, 1),
             params["bn2_gamma"], params["bn2_beta"],
             params["bn2_mean"], params["bn2_var"])
    if downsample or in_channels != out_channels:
        identity = bn(conv(x, params["ds_w"], params["ds_b"], stride, 0),
                      params["bnd_gamma"], params["bnd_beta"],
                      params["bnd_mean"], params["bnd_var"])
    else:
        identity = x
    return lrelu(out + identity)


# --------------------------------------------------------------------------- #
def make_params(key, in_channels, out_channels):
    ks = jax.random.split(key, 12)
    f32 = jnp.float32
    p = {
        "conv1_w": 0.1 * jax.random.normal(ks[0], (out_channels, in_channels, 3, 3), f32),
        "conv1_b": 0.1 * jax.random.normal(ks[1], (out_channels,), f32),
        "bn1_gamma": 1.0 + 0.1 * jax.random.normal(ks[2], (out_channels,), f32),
        "bn1_beta": 0.1 * jax.random.normal(ks[3], (out_channels,), f32),
        "bn1_mean": 0.05 * jax.random.normal(ks[4], (out_channels,), f32),
        "bn1_var": 0.5 + jax.random.uniform(ks[5], (out_channels,), f32),
        "conv2_w": 0.1 * jax.random.normal(ks[6], (out_channels, out_channels, 3, 3), f32),
        "conv2_b": 0.1 * jax.random.normal(ks[7], (out_channels,), f32),
        "bn2_gamma": 1.0 + 0.1 * jax.random.normal(ks[8], (out_channels,), f32),
        "bn2_beta": 0.1 * jax.random.normal(ks[9], (out_channels,), f32),
        "bn2_mean": 0.05 * jax.random.normal(ks[10], (out_channels,), f32),
        "bn2_var": 0.5 + jax.random.uniform(ks[11], (out_channels,), f32),
    }
    ks2 = jax.random.split(jax.random.fold_in(key, 123), 6)
    p.update({
        "ds_w": 0.1 * jax.random.normal(ks2[0], (out_channels, in_channels, 1, 1), f32),
        "ds_b": 0.1 * jax.random.normal(ks2[1], (out_channels,), f32),
        "bnd_gamma": 1.0 + 0.1 * jax.random.normal(ks2[2], (out_channels,), f32),
        "bnd_beta": 0.1 * jax.random.normal(ks2[3], (out_channels,), f32),
        "bnd_mean": 0.05 * jax.random.normal(ks2[4], (out_channels,), f32),
        "bnd_var": 0.5 + jax.random.uniform(ks2[5], (out_channels,), f32),
    })
    return p


if __name__ == "__main__":
    key = jax.random.PRNGKey(0)
    kx1, kp1, kx2, kp2 = jax.random.split(key, 4)

    # --- test 1: downsampling block (stride 2 + 1x1-conv shortcut), NCHW (2,4,16,16) ---
    x1 = jax.random.normal(kx1, (2, 4, 16, 16), jnp.float32)
    params1 = make_params(kp1, 4, 8)
    fwd1 = jax.jit(functools.partial(residual_block_2d, in_channels=4,
                                     out_channels=8, downsample=True))
    out1 = jax.block_until_ready(fwd1(x1, params1))
    ref1 = jax.block_until_ready(reference_forward(x1, params1, 4, 8, True))
    assert out1.shape == ref1.shape, (out1.shape, ref1.shape)
    err1 = float(jnp.max(jnp.abs(out1 - ref1)))
    # bf16 MXU inputs, bf16 staging and bf16 writeback (f32 accumulate) -> bf16-level tol.
    assert jnp.allclose(out1, ref1, rtol=5e-2, atol=7.5e-2), err1

    # --- test 2: identity shortcut (stride 1, in_channels == out_channels) ---
    x2 = jax.random.normal(kx2, (2, 8, 16, 16), jnp.float32)
    params2 = make_params(kp2, 8, 8)
    fwd2 = jax.jit(functools.partial(residual_block_2d, in_channels=8,
                                     out_channels=8, downsample=False))
    out2 = jax.block_until_ready(fwd2(x2, params2))
    ref2 = jax.block_until_ready(reference_forward(x2, params2, 8, 8, False))
    assert out2.shape == ref2.shape, (out2.shape, ref2.shape)
    err2 = float(jnp.max(jnp.abs(out2 - ref2)))
    assert jnp.allclose(out2, ref2, rtol=5e-2, atol=7.5e-2), err2

    print("KERNEL_OK")
</pallas_src>

<mosaic_0001>
module attributes {stable_mosaic.version = 11 : i64} {
  func.func @_residual_block_kernel(%arg0: i32, %arg1: memref<1x144x24xbf16, #tpu.memory_space<vmem>>, %arg2: memref<3x24x128xbf16, #tpu.memory_space<vmem>>, %arg3: memref<1x128xf32, #tpu.memory_space<vmem>>, %arg4: memref<1x128xf32, #tpu.memory_space<vmem>>, %arg5: memref<3x384x128xbf16, #tpu.memory_space<vmem>>, %arg6: memref<1x128xf32, #tpu.memory_space<vmem>>, %arg7: memref<1x128xf32, #tpu.memory_space<vmem>>, %arg8: memref<24x128xbf16, #tpu.memory_space<vmem>>, %arg9: memref<1x128xf32, #tpu.memory_space<vmem>>, %arg10: memref<1x128xf32, #tpu.memory_space<vmem>>, %arg11: memref<1x64x128xbf16, #tpu.memory_space<vmem>>, %arg12: memref<80x384xbf16, #tpu.memory_space<vmem>>) attributes {dimension_semantics = [#tpu.dimension_semantics<parallel>], iteration_bounds = array<i64: 2>, scalar_prefetch = 0 : i64, scratch_operands = 1 : i64, tpu.core_type = #tpu.core_type<tc>, window_params = [{transform_indices = @transform_0, window_bounds = array<i64: 1, 144, 24>}, {pipeline_mode = #tpu.pipeline_mode<synchronous>, transform_indices = @transform_1, window_bounds = array<i64: 3, 24, 128>}, {pipeline_mode = #tpu.pipeline_mode<synchronous>, transform_indices = @transform_2, window_bounds = array<i64: 1, 128>}, {pipeline_mode = #tpu.pipeline_mode<synchronous>, transform_indices = @transform_3, window_bounds = array<i64: 1, 128>}, {pipeline_mode = #tpu.pipeline_mode<synchronous>, transform_indices = @transform_4, window_bounds = array<i64: 3, 384, 128>}, {pipeline_mode = #tpu.pipeline_mode<synchronous>, transform_indices = @transform_5, window_bounds = array<i64: 1, 128>}, {pipeline_mode = #tpu.pipeline_mode<synchronous>, transform_indices = @transform_6, window_bounds = array<i64: 1, 128>}, {pipeline_mode = #tpu.pipeline_mode<synchronous>, transform_indices = @transform_7, window_bounds = array<i64: 24, 128>}, {pipeline_mode = #tpu.pipeline_mode<synchronous>, transform_indices = @transform_8, window_bounds = array<i64: 1, 128>}, {pipeline_mode = #tpu.pipeline_mode<synchronous>, transform_indices = @transform_9, window_bounds = array<i64: 1, 128>}, {transform_indices = @transform_10, window_bounds = array<i64: 1, 64, 128>}]} {
    %c0 = arith.constant 0 : index
    %c0_0 = arith.constant 0 : index
    %c0_1 = arith.constant 0 : index
    %0 = vector.load %arg1[%c0, %c0_0, %c0_1] : memref<1x144x24xbf16, #tpu.memory_space<vmem>>, vector<1x64x24xbf16>
    %1 = vector.shape_cast %0 : vector<1x64x24xbf16> to vector<64x24xbf16>
    %c0_2 = arith.constant 0 : index
    %c0_3 = arith.constant 0 : index
    %c0_4 = arith.constant 0 : index
    %2 = vector.load %arg2[%c0_2, %c0_3, %c0_4] : memref<3x24x128xbf16, #tpu.memory_space<vmem>>, vector<1x24x128xbf16>
    %3 = vector.shape_cast %2 : vector<1x24x128xbf16> to vector<24x128xbf16>
    %cst = arith.constant dense<0.000000e+00> : vector<64x128xf32>
    %4 = tpu.matmul %1, %3, %cst {dimension_numbers = #tpu.dot_dimension_numbers<[1], [0], [0], [1], [0, 0, 1, 1], [], []>} : vector<64x24xbf16>, vector<24x128xbf16>, vector<64x128xf32> -> vector<64x128xf32>
    %c0_5 = arith.constant 0 : index
    %c72 = arith.constant 72 : index
    %c0_6 = arith.constant 0 : index
    %5 = vector.load %arg1[%c0_5, %c72, %c0_6] : memref<1x144x24xbf16, #tpu.memory_space<vmem>>, vector<1x64x24xbf16>
    %6 = vector.shape_cast %5 : vector<1x64x24xbf16> to vector<64x24xbf16>
    %c1 = arith.constant 1 : index
    %c0_7 = arith.constant 0 : index
    %c0_8 = arith.constant 0 : index
    %7 = vector.load %arg2[%c1, %c0_7, %c0_8] : memref<3x24x128xbf16, #tpu.memory_space<vmem>>, vector<1x24x128xbf16>
    %8 = vector.shape_cast %7 : vector<1x24x128xbf16> to vector<24x128xbf16>
    %cst_9 = arith.constant dense<0.000000e+00> : vector<64x128xf32>
    %9 = tpu.matmul %6, %8, %cst_9 {dimension_numbers = #tpu.dot_dimension_numbers<[1], [0], [0], [1], [0, 0, 1, 1], [], []>} : vector<64x24xbf16>, vector<24x128xbf16>, vector<64x128xf32> -> vector<64x128xf32>
    %10 = arith.addf %4, %9 : vector<64x128xf32>
    %c0_10 = arith.constant 0 : index
    %c8 = arith.constant 8 : index
    %c0_11 = arith.constant 0 : index
    %11 = vector.load %arg1[%c0_10, %c8, %c0_11] : memref<1x144x24xbf16, #tpu.memory_space<vmem>>, vector<1x64x24xbf16>
    %12 = vector.shape_cast %11 : vector<1x64x24xbf16> to vector<64x24xbf16>
    %c2 = arith.constant 2 : index
    %c0_12 = arith.constant 0 : index
    %c0_13 = arith.constant 0 : index
    %13 = vector.load %arg2[%c2, %c0_12, %c0_13] : memref<3x24x128xbf16, #tpu.memory_space<vmem>>, vector<1x24x128xbf16>
    %14 = vector.shape_cast %13 : vector<1x24x128xbf16> to vector<24x128xbf16>
    %cst_14 = arith.constant dense<0.000000e+00> : vector<64x128xf32>
    %15 = tpu.matmul %12, %14, %cst_14 {dimension_numbers = #tpu.dot_dimension_numbers<[1], [0], [0], [1], [0, 0, 1, 1], [], []>} : vector<64x24xbf16>, vector<24x128xbf16>, vector<64x128xf32> -> vector<64x128xf32>
    %16 = arith.addf %10, %15 : vector<64x128xf32>
    %c0_15 = arith.constant 0 : index
    %c0_16 = arith.constant 0 : index
    %17 = vector.load %arg3[%c0_15, %c0_16] : memref<1x128xf32, #tpu.memory_space<vmem>>, vector<1x128xf32>
    %18 = vector.broadcast %17 : vector<1x128xf32> to vector<64x128xf32>
    %19 = arith.mulf %16, %18 : vector<64x128xf32>
    %c0_17 = arith.constant 0 : index
    %c0_18 = arith.constant 0 : index
    %20 = vector.load %arg4[%c0_17, %c0_18] : memref<1x128xf32, #tpu.memory_space<vmem>>, vector<1x128xf32>
    %21 = vector.broadcast %20 : vector<1x128xf32> to vector<64x128xf32>
    %22 = arith.addf %19, %21 : vector<64x128xf32>
    %cst_19 = arith.constant 0.00999999977 : f32
    %23 = vector.broadcast %cst_19 : f32 to vector<64x128xf32>
    %24 = arith.mulf %23, %22 : vector<64x128xf32>
    %25 = arith.maximumf %22, %24 : vector<64x128xf32>
    %26 = vector.shape_cast %25 : vector<64x128xf32> to vector<8x8x128xf32>
    %cst_20 = arith.constant 0.000000e+00 : f32
    %27 = vector.broadcast %cst_20 : f32 to vector<8x1x128xf32>
    %28 = vector.extract_strided_slice %26 {offsets = [0, 0, 0], sizes = [8, 7, 128], strides = [1, 1, 1]} : vector<8x8x128xf32> to vector<8x7x128xf32>
    %29 = tpu.concatenate %27, %28 in 1 : vector<8x1x128xf32>, vector<8x7x128xf32> -> vector<8x8x128xf32>
    %30 = vector.shape_cast %29 : vector<8x8x128xf32> to vector<64x128xf32>
    %31 = vector.extract_strided_slice %26 {offsets = [0, 1, 0], sizes = [8, 7, 128], strides = [1, 1, 1]} : vector<8x8x128xf32> to vector<8x7x128xf32>
    %32 = tpu.concatenate %31, %27 in 1 : vector<8x7x128xf32>, vector<8x1x128xf32> -> vector<8x8x128xf32>
    %33 = vector.shape_cast %32 : vector<8x8x128xf32> to vector<64x128xf32>
    %cst_21 = arith.constant 0.000000e+00 : bf16
    %34 = vector.broadcast %cst_21 : bf16 to vector<8x384xbf16>
    %c0_22 = arith.constant 0 : index
    %c0_23 = arith.constant 0 : index
    %35 = vector.load %arg12[%c0_22, %c0_23] : memref<80x384xbf16, #tpu.memory_space<vmem>>, vector<8x384xbf16>
    tpu.vector_store %arg12[%c0_22, %c0_23], %34 {strides = array<i32>} : memref<80x384xbf16, #tpu.memory_space<vmem>>, vector<8x384xbf16>,
    %c72_24 = arith.constant 72 : index
    %c0_25 = arith.constant 0 : index
    %36 = vector.load %arg12[%c72_24, %c0_25] : memref<80x384xbf16, #tpu.memory_space<vmem>>, vector<8x384xbf16>
    tpu.vector_store %arg12[%c72_24, %c0_25], %34 {strides = array<i32>} : memref<80x384xbf16, #tpu.memory_space<vmem>>, vector<8x384xbf16>,
    %37 = arith.truncf %30 : vector<64x128xf32> to vector<64x128xbf16>
    %c8_26 = arith.constant 8 : index
    %c0_27 = arith.constant 0 : index
    %38 = vector.load %arg12[%c8_26, %c0_27] : memref<80x384xbf16, #tpu.memory_space<vmem>>, vector<64x128xbf16>
    tpu.vector_store %arg12[%c8_26, %c0_27], %37 {strides = array<i32>} : memref<80x384xbf16, #tpu.memory_space<vmem>>, vector<64x128xbf16>,
    %39 = arith.truncf %25 : vector<64x128xf32> to vector<64x128xbf16>
    %c8_28 = arith.constant 8 : index
    %c128 = arith.constant 128 : index
    %40 = vector.load %arg12[%c8_28, %c128] : memref<80x384xbf16, #tpu.memory_space<vmem>>, vector<64x128xbf16>
    tpu.vector_store %arg12[%c8_28, %c128], %39 {strides = array<i32>} : memref<80x384xbf16, #tpu.memory_space<vmem>>, vector<64x128xbf16>,
    %41 = arith.truncf %33 : vector<64x128xf32> to vector<64x128xbf16>
    %c8_29 = arith.constant 8 : index
    %c256 = arith.constant 256 : index
    %42 = vector.load %arg12[%c8_29, %c256] : memref<80x384xbf16, #tpu.memory_space<vmem>>, vector<64x128xbf16>
    tpu.vector_store %arg12[%c8_29, %c256], %41 {strides = array<i32>} : memref<80x384xbf16, #tpu.memory_space<vmem>>, vector<64x128xbf16>,
    %c0_30 = arith.constant 0 : index
    %c0_31 = arith.constant 0 : index
    %43 = vector.load %arg12[%c0_30, %c0_31] : memref<80x384xbf16, #tpu.memory_space<vmem>>, vector<64x384xbf16>
    %c0_32 = arith.constant 0 : index
    %c0_33 = arith.constant 0 : index
    %c0_34 = arith.constant 0 : index
    %44 = vector.load %arg5[%c0_32, %c0_33, %c0_34] : memref<3x384x128xbf16, #tpu.memory_space<vmem>>, vector<1x384x128xbf16>
    %45 = vector.shape_cast %44 : vector<1x384x128xbf16> to vector<384x128xbf16>
    %cst_35 = arith.constant dense<0.000000e+00> : vector<64x128xf32>
    %46 = tpu.matmul %43, %45, %cst_35 {dimension_numbers = #tpu.dot_dimension_numbers<[1], [0], [0], [1], [0, 0, 1, 1], [], []>} : vector<64x384xbf16>, vector<384x128xbf16>, vector<64x128xf32> -> vector<64x128xf32>
    %c8_36 = arith.constant 8 : index
    %c0_37 = arith.constant 0 : index
    %47 = vector.load %arg12[%c8_36, %c0_37] : memref<80x384xbf16, #tpu.memory_space<vmem>>, vector<64x384xbf16>
    %c1_38 = arith.constant 1 : index
    %c0_39 = arith.constant 0 : index
    %c0_40 = arith.constant 0 : index
    %48 = vector.load %arg5[%c1_38, %c0_39, %c0_40] : memref<3x384x128xbf16, #tpu.memory_space<vmem>>, vector<1x384x128xbf16>
    %49 = vector.shape_cast %48 : vector<1x384x128xbf16> to vector<384x128xbf16>
    %cst_41 = arith.constant dense<0.000000e+00> : vector<64x128xf32>
    %50 = tpu.matmul %47, %49, %cst_41 {dimension_numbers = #tpu.dot_dimension_numbers<[1], [0], [0], [1], [0, 0, 1, 1], [], []>} : vector<64x384xbf16>, vector<384x128xbf16>, vector<64x128xf32> -> vector<64x128xf32>
    %51 = arith.addf %46, %50 : vector<64x128xf32>
    %c16 = arith.constant 16 : index
    %c0_42 = arith.constant 0 : index
    %52 = vector.load %arg12[%c16, %c0_42] : memref<80x384xbf16, #tpu.memory_space<vmem>>, vector<64x384xbf16>
    %c2_43 = arith.constant 2 : index
    %c0_44 = arith.constant 0 : index
    %c0_45 = arith.constant 0 : index
    %53 = vector.load %arg5[%c2_43, %c0_44, %c0_45] : memref<3x384x128xbf16, #tpu.memory_space<vmem>>, vector<1x384x128xbf16>
    %54 = vector.shape_cast %53 : vector<1x384x128xbf16> to vector<384x128xbf16>
    %cst_46 = arith.constant dense<0.000000e+00> : vector<64x128xf32>
    %55 = tpu.matmul %52, %54, %cst_46 {dimension_numbers = #tpu.dot_dimension_numbers<[1], [0], [0], [1], [0, 0, 1, 1], [], []>} : vector<64x384xbf16>, vector<384x128xbf16>, vector<64x128xf32> -> vector<64x128xf32>
    %56 = arith.addf %51, %55 : vector<64x128xf32>
    %c0_47 = arith.constant 0 : index
    %c0_48 = arith.constant 0 : index
    %57 = vector.load %arg6[%c0_47, %c0_48] : memref<1x128xf32, #tpu.memory_space<vmem>>, vector<1x128xf32>
    %58 = vector.broadcast %57 : vector<1x128xf32> to vector<64x128xf32>
    %59 = arith.mulf %56, %58 : vector<64x128xf32>
    %c0_49 = arith.constant 0 : index
    %c0_50 = arith.constant 0 : index
    %60 = vector.load %arg7[%c0_49, %c0_50] : memref<1x128xf32, #tpu.memory_space<vmem>>, vector<1x128xf32>
    %61 = vector.broadcast %60 : vector<1x128xf32> to vector<64x128xf32>
    %62 = arith.addf %59, %61 : vector<64x128xf32>
    %c0_51 = arith.constant 0 : index
    %c72_52 = arith.constant 72 : index
    %c0_53 = arith.constant 0 : index
    %63 = vector.load %arg1[%c0_51, %c72_52, %c0_53] : memref<1x144x24xbf16, #tpu.memory_space<vmem>>, vector<1x64x24xbf16>
    %64 = vector.shape_cast %63 : vector<1x64x24xbf16> to vector<64x24xbf16>
    %c0_54 = arith.constant 0 : index
    %c0_55 = arith.constant 0 : index
    %65 = vector.load %arg8[%c0_54, %c0_55] : memref<24x128xbf16, #tpu.memory_space<vmem>>, vector<24x128xbf16>
    %cst_56 = arith.constant dense<0.000000e+00> : vector<64x128xf32>
    %66 = tpu.matmul %64, %65, %cst_56 {dimension_numbers = #tpu.dot_dimension_numbers<[1], [0], [0], [1], [0, 0, 1, 1], [], []>} : vector<64x24xbf16>, vector<24x128xbf16>, vector<64x128xf32> -> vector<64x128xf32>
    %c0_57 = arith.constant 0 : index
    %c0_58 = arith.constant 0 : index
    %67 = vector.load %arg9[%c0_57, %c0_58] : memref<1x128xf32, #tpu.memory_space<vmem>>, vector<1x128xf32>
    %68 = vector.broadcast %67 : vector<1x128xf32> to vector<64x128xf32>
    %69 = arith.mulf %66, %68 : vector<64x128xf32>
    %c0_59 = arith.constant 0 : index
    %c0_60 = arith.constant 0 : index
    %70 = vector.load %arg10[%c0_59, %c0_60] : memref<1x128xf32, #tpu.memory_space<vmem>>, vector<1x128xf32>
    %71 = vector.broadcast %70 : vector<1x128xf32> to vector<64x128xf32>
    %72 = arith.addf %69, %71 : vector<64x128xf32>
    %73 = arith.addf %62, %72 : vector<64x128xf32>
    %cst_61 = arith.constant 0.00999999977 : f32
    %74 = vector.broadcast %cst_61 : f32 to vector<64x128xf32>
    %75 = arith.mulf %74, %73 : vector<64x128xf32>
    %76 = arith.maximumf %73, %75 : vector<64x128xf32>
    %77 = arith.truncf %76 : vector<64x128xf32> to vector<64x128xbf16>
    %c0_62 = arith.constant 0 : index
    %c0_63 = arith.constant 0 : index
    %c0_64 = arith.constant 0 : index
    %78 = vector.load %arg11[%c0_62, %c0_63, %c0_64] : memref<1x64x128xbf16, #tpu.memory_space<vmem>>, vector<1x64x128xbf16>
    %79 = vector.shape_cast %78 : vector<1x64x128xbf16> to vector<64x128xbf16>
    %80 = vector.shape_cast %77 : vector<64x128xbf16> to vector<1x64x128xbf16>
    tpu.vector_store %arg11[%c0_62, %c0_63, %c0_64], %80 {strides = array<i32>} : memref<1x64x128xbf16, #tpu.memory_space<vmem>>, vector<1x64x128xbf16>,
    return
  }
  func.func @transform_0(%arg0: i32) -> (i32, i32, i32) {
    %c0_i32 = arith.constant 0 : i32
    %c0_i32_0 = arith.constant 0 : i32
    %c0_i32_1 = arith.constant 0 : i32
    return %arg0, %c0_i32, %c0_i32_0 : i32, i32, i32
  }
  func.func @transform_1(%arg0: i32) -> (i32, i32, i32) {
    %c0_i32 = arith.constant 0 : i32
    %c0_i32_0 = arith.constant 0 : i32
    %c0_i32_1 = arith.constant 0 : i32
    %c0_i32_2 = arith.constant 0 : i32
    return %c0_i32, %c0_i32_0, %c0_i32_1 : i32, i32, i32
  }
  func.func @transform_2(%arg0: i32) -> (i32, i32) {
    %c0_i32 = arith.constant 0 : i32
    %c0_i32_0 = arith.constant 0 : i32
    %c0_i32_1 = arith.constant 0 : i32
    return %c0_i32, %c0_i32_0 : i32, i32
  }
  func.func @transform_3(%arg0: i32) -> (i32, i32) {
    %c0_i32 = arith.constant 0 : i32
    %c0_i32_0 = arith.constant 0 : i32
    %c0_i32_1 = arith.constant 0 : i32
    return %c0_i32, %c0_i32_0 : i32, i32
  }
  func.func @transform_4(%arg0: i32) -> (i32, i32, i32) {
    %c0_i32 = arith.constant 0 : i32
    %c0_i32_0 = arith.constant 0 : i32
    %c0_i32_1 = arith.constant 0 : i32
    %c0_i32_2 = arith.constant 0 : i32
    return %c0_i32, %c0_i32_0, %c0_i32_1 : i32, i32, i32
  }
  func.func @transform_5(%arg0: i32) -> (i32, i32) {
    %c0_i32 = arith.constant 0 : i32
    %c0_i32_0 = arith.constant 0 : i32
    %c0_i32_1 = arith.constant 0 : i32
    return %c0_i32, %c0_i32_0 : i32, i32
  }
  func.func @transform_6(%arg0: i32) -> (i32, i32) {
    %c0_i32 = arith.constant 0 : i32
    %c0_i32_0 = arith.constant 0 : i32
    %c0_i32_1 = arith.constant 0 : i32
    return %c0_i32, %c0_i32_0 : i32, i32
  }
  func.func @transform_7(%arg0: i32) -> (i32, i32) {
    %c0_i32 = arith.constant 0 : i32
    %c0_i32_0 = arith.constant 0 : i32
    %c0_i32_1 = arith.constant 0 : i32
    return %c0_i32, %c0_i32_0 : i32, i32
  }
  func.func @transform_8(%arg0: i32) -> (i32, i32) {
    %c0_i32 = arith.constant 0 : i32
    %c0_i32_0 = arith.constant 0 : i32
    %c0_i32_1 = arith.constant 0 : i32
    return %c0_i32, %c0_i32_0 : i32, i32
  }
  func.func @transform_9(%arg0: i32) -> (i32, i32) {
    %c0_i32 = arith.constant 0 : i32
    %c0_i32_0 = arith.constant 0 : i32
    %c0_i32_1 = arith.constant 0 : i32
    return %c0_i32, %c0_i32_0 : i32, i32
  }
  func.func @transform_10(%arg0: i32) -> (i32, i32, i32) {
    %c0_i32 = arith.constant 0 : i32
    %c0_i32_0 = arith.constant 0 : i32
    %c0_i32_1 = arith.constant 0 : i32
    return %arg0, %c0_i32, %c0_i32_0 : i32, i32, i32
  }
}

</mosaic_0001>

<llo_original>
// kernel: residual_block_2d.1
$region0: #{residual_block_2d.1}
  #allocation0 [shape = 'u32[]', space=smem, size = 0x4, offset = 0x4, fixed_abs, tag = 'smem constant byte address 0x4 - core index']
  #allocation1 [shape = 'u32[144,128]{1,0:T(1,128)}', space=vmem, size = 0x12000, scoped, tag = 'internal scratch']
  #allocation2 [shape = 'bf16[80,384]{1,0:T(8,128)(2,1)}', space=vmem, size = 0xf000, scoped, tag = 'scratch operand']
  %s0 = inlined_call_operand.vmem [shape: bf16[2,144,24], index: 0, kind: input, shape index: {}]
  %s1 = inlined_call_operand.vmem [shape: bf16[3,24,128], index: 1, kind: input, shape index: {}]
  %s2 = inlined_call_operand.vmem [shape: f32[1,128], index: 2, kind: input, shape index: {}]
  %s3 = inlined_call_operand.vmem [shape: f32[1,128], index: 3, kind: input, shape index: {}]
  %s4 = inlined_call_operand.vmem [shape: bf16[3,384,128], index: 4, kind: input, shape index: {}]
  %s5 = inlined_call_operand.vmem [shape: f32[1,128], index: 5, kind: input, shape index: {}]
  %s6 = inlined_call_operand.vmem [shape: f32[1,128], index: 6, kind: input, shape index: {}]
  %s7 = inlined_call_operand.vmem [shape: bf16[24,128], index: 7, kind: input, shape index: {}]
  %s8 = inlined_call_operand.vmem [shape: f32[1,128], index: 8, kind: input, shape index: {}]
  %s9 = inlined_call_operand.vmem [shape: f32[1,128], index: 9, kind: input, shape index: {}]
  %s10 = inlined_call_operand.vmem [shape: bf16[2,64,128], index: 10, kind: output, shape index: {}]
  %s11 = sld [smem:[#allocation0]]
  $region73: #{residual_block_2d.1} parent=0
    _
  %s13 = ssub.s32 1, %s11
  %s14 = scalar_select 0, %s13, %s11
  loop: start=0, step=1, limit=4
  $region2: #{residual_block_2d.1} parent=0 // loop_pre_header
    _
  $region3: #{residual_block_2d.1} parent=0 // loop_header
    %s16 = sphi 0, %s20
    %p17 = scmp.ge.s32.totalorder %s16, 4
    %s26 = sphi 0, %s28
    %s29 = sphi 0, %s26
    %s30 = sphi 0, %s29
    %s46 = sphi 0, %s30
    %s50 = sphi 0, %s50
    %s52 = sphi 0, %s50
    %s53 = sphi 0, %s52
    %s67 = sphi 0, %s53
    %s71 = sphi 0, %s71
    %s73 = sphi 0, %s71
    %s74 = sphi 0, %s73
    %s88 = sphi 0, %s74
    %s92 = sphi 0, %s92
    %s94 = sphi 0, %s92
    %s95 = sphi 0, %s94
    %s109 = sphi 0, %s95
    %s113 = sphi 0, %s113
    %s115 = sphi 0, %s113
    %s116 = sphi 0, %s115
    %s130 = sphi 0, %s116
    %s134 = sphi 0, %s134
    %s136 = sphi 0, %s134
    %s137 = sphi 0, %s136
    %s151 = sphi 0, %s137
    %s155 = sphi 0, %s155
    %s157 = sphi 0, %s155
    %s158 = sphi 0, %s157
    %s172 = sphi 0, %s158
    %s176 = sphi 0, %s176
    %s178 = sphi 0, %s176
    %s179 = sphi 0, %s178
    %s193 = sphi 0, %s179
    %s197 = sphi 0, %s197
    %s199 = sphi 0, %s197
    %s200 = sphi 0, %s199
    %s214 = sphi 0, %s200
    %s218 = sphi 0, %s218
    %s220 = sphi 0, %s218
    %s221 = sphi 0, %s220
    %s235 = sphi 0, %s221
    %s241 = sphi 0, %s243
    %s244 = sphi 0, %s241
    %s245 = sphi 0, %s244
    %s261 = sphi 0, %s245
  $region4: #{residual_block_2d.1} parent=0 // loop_header_branch
    %19 = sbr.rel (%p17) target = $region8
  $region5: #{residual_block_2d.1} parent=0 // loop_body
    %s21 = ssub.s32 %s16, 1
    %s22 = ssub.s32 %s16, 2
    %s23 = sadd.s32 %s16, 1
    %s24 = ssub.s32 %s16, %s23
    %p25 = scmp.eq.s32.totalorder %s24, 0
    %s27 = sadd.s32 %s26, 1
    %s28 = scalar_select %p25, %s26, %s27
    %p31 = pneg %p25
    %p32 = scmp.eq.s32.totalorder %s16, 1
    %p33 = por %p31, %p32
    %p34 = scmp.ne.s32.totalorder %s26, %s29
    %p35 = scmp.eq.s32.totalorder %s16, 0
    %p36 = por %p34, %p35
    %p37 = scmp.ne.s32.totalorder %s26, %s29
    %p38 = scmp.eq.s32.totalorder %s21, 1
    %p39 = por %p37, %p38
    %p40 = scmp.ne.s32.totalorder %s29, %s30
    %p41 = scmp.eq.s32.totalorder %s21, 0
    %p42 = por %p40, %p41
    %p43 = scmp.ne.s32.totalorder %s29, %s30
    %p44 = scmp.eq.s32.totalorder %s22, 1
    %p45 = por %p43, %p44
    %p47 = scmp.ne.s32.totalorder %s30, %s46
    %p48 = scmp.eq.s32.totalorder %s22, 0
    %p49 = por %p47, %p48
    %s51 = sadd.s32 %s50, 1
    %p54 = scmp.eq.s32.totalorder %s16, 1
    %p55 = scmp.ne.s32.totalorder %s50, %s52
    %p56 = scmp.eq.s32.totalorder %s16, 0
    %p57 = por %p55, %p56
    %p58 = scmp.ne.s32.totalorder %s50, %s52
    %p59 = scmp.eq.s32.totalorder %s21, 1
    %p60 = por %p58, %p59
    %p61 = scmp.ne.s32.totalorder %s52, %s53
    %p62 = scmp.eq.s32.totalorder %s21, 0
    %p63 = por %p61, %p62
    %p64 = scmp.ne.s32.totalorder %s52, %s53
    %p65 = scmp.eq.s32.totalorder %s22, 1
    %p66 = por %p64, %p65
    %p68 = scmp.ne.s32.totalorder %s53, %s67
    %p69 = scmp.eq.s32.totalorder %s22, 0
    %p70 = por %p68, %p69
    %s72 = sadd.s32 %s71, 1
    %p75 = scmp.eq.s32.totalorder %s16, 1
    %p76 = scmp.ne.s32.totalorder %s71, %s73
    %p77 = scmp.eq.s32.totalorder %s16, 0
    %p78 = por %p76, %p77
    %p79 = scmp.ne.s32.totalorder %s71, %s73
    %p80 = scmp.eq.s32.totalorder %s21, 1
    %p81 = por %p79, %p80
    %p82 = scmp.ne.s32.totalorder %s73, %s74
    %p83 = scmp.eq.s32.totalorder %s21, 0
    %p84 = por %p82, %p83
    %p85 = scmp.ne.s32.totalorder %s73, %s74
    %p86 = scmp.eq.s32.totalorder %s22, 1
    %p87 = por %p85, %p86
    %p89 = scmp.ne.s32.totalorder %s74, %s88
    %p90 = scmp.eq.s32.totalorder %s22, 0
    %p91 = por %p89, %p90
    %s93 = sadd.s32 %s92, 1
    %p96 = scmp.eq.s32.totalorder %s16, 1
    %p97 = scmp.ne.s32.totalorder %s92, %s94
    %p98 = scmp.eq.s32.totalorder %s16, 0
    %p99 = por %p97, %p98
    %p100 = scmp.ne.s32.totalorder %s92, %s94
    %p101 = scmp.eq.s32.totalorder %s21, 1
    %p102 = por %p100, %p101
    %p103 = scmp.ne.s32.totalorder %s94, %s95
    %p104 = scmp.eq.s32.totalorder %s21, 0
    %p105 = por %p103, %p104
    %p106 = scmp.ne.s32.totalorder %s94, %s95
    %p107 = scmp.eq.s32.totalorder %s22, 1
    %p108 = por %p106, %p107
    %p110 = scmp.ne.s32.totalorder %s95, %s109
    %p111 = scmp.eq.s32.totalorder %s22, 0
    %p112 = por %p110, %p111
    %s114 = sadd.s32 %s113, 1
    %p117 = scmp.eq.s32.totalorder %s16, 1
    %p118 = scmp.ne.s32.totalorder %s113, %s115
    %p119 = scmp.eq.s32.totalorder %s16, 0
    %p120 = por %p118, %p119
    %p121 = scmp.ne.s32.totalorder %s113, %s115
    %p122 = scmp.eq.s32.totalorder %s21, 1
    %p123 = por %p121, %p122
    %p124 = scmp.ne.s32.totalorder %s115, %s116
    %p125 = scmp.eq.s32.totalorder %s21, 0
    %p126 = por %p124, %p125
    %p127 = scmp.ne.s32.totalorder %s115, %s116
    %p128 = scmp.eq.s32.totalorder %s22, 1
    %p129 = por %p127, %p128
    %p131 = scmp.ne.s32.totalorder %s116, %s130
    %p132 = scmp.eq.s32.totalorder %s22, 0
    %p133 = por %p131, %p132
    %s135 = sadd.s32 %s134, 1
    %p138 = scmp.eq.s32.totalorder %s16, 1
    %p139 = scmp.ne.s32.totalorder %s134, %s136
    %p140 = scmp.eq.s32.totalorder %s16, 0
    %p141 = por %p139, %p140
    %p142 = scmp.ne.s32.totalorder %s134, %s136
    %p143 = scmp.eq.s32.totalorder %s21, 1
    %p144 = por %p142, %p143
    %p145 = scmp.ne.s32.totalorder %s136, %s137
    %p146 = scmp.eq.s32.totalorder %s21, 0
    %p147 = por %p145, %p146
    %p148 = scmp.ne.s32.totalorder %s136, %s137
    %p149 = scmp.eq.s32.totalorder %s22, 1
    %p150 = por %p148, %p149
    %p152 = scmp.ne.s32.totalorder %s137, %s151
    %p153 = scmp.eq.s32.totalorder %s22, 0
    %p154 = por %p152, %p153
    %s156 = sadd.s32 %s155, 1
    %p159 = scmp.eq.s32.totalorder %s16, 1
    %p160 = scmp.ne.s32.totalorder %s155, %s157
    %p161 = scmp.eq.s32.totalorder %s16, 0
    %p162 = por %p160, %p161
    %p163 = scmp.ne.s32.totalorder %s155, %s157
    %p164 = scmp.eq.s32.totalorder %s21, 1
    %p165 = por %p163, %p164
    %p166 = scmp.ne.s32.totalorder %s157, %s158
    %p167 = scmp.eq.s32.totalorder %s21, 0
    %p168 = por %p166, %p167
    %p169 = scmp.ne.s32.totalorder %s157, %s158
    %p170 = scmp.eq.s32.totalorder %s22, 1
    %p171 = por %p169, %p170
    %p173 = scmp.ne.s32.totalorder %s158, %s172
    %p174 = scmp.eq.s32.totalorder %s22, 0
    %p175 = por %p173, %p174
    %s177 = sadd.s32 %s176, 1
    %p180 = scmp.eq.s32.totalorder %s16, 1
    %p181 = scmp.ne.s32.totalorder %s176, %s178
    %p182 = scmp.eq.s32.totalorder %s16, 0
    %p183 = por %p181, %p182
    %p184 = scmp.ne.s32.totalorder %s176, %s178
    %p185 = scmp.eq.s32.totalorder %s21, 1
    %p186 = por %p184, %p185
    %p187 = scmp.ne.s32.totalorder %s178, %s179
    %p188 = scmp.eq.s32.totalorder %s21, 0
    %p189 = por %p187, %p188
    %p190 = scmp.ne.s32.totalorder %s178, %s179
    %p191 = scmp.eq.s32.totalorder %s22, 1
    %p192 = por %p190, %p191
    %p194 = scmp.ne.s32.totalorder %s179, %s193
    %p195 = scmp.eq.s32.totalorder %s22, 0
    %p196 = por %p194, %p195
    %s198 = sadd.s32 %s197, 1
    %p201 = scmp.eq.s32.totalorder %s16, 1
    %p202 = scmp.ne.s32.totalorder %s197, %s199
    %p203 = scmp.eq.s32.totalorder %s16, 0
    %p204 = por %p202, %p203
    %p205 = scmp.ne.s32.totalorder %s197, %s199
    %p206 = scmp.eq.s32.totalorder %s21, 1
    %p207 = por %p205, %p206
    %p208 = scmp.ne.s32.totalorder %s199, %s200
    %p209 = scmp.eq.s32.totalorder %s21, 0
    %p210 = por %p208, %p209
    %p211 = scmp.ne.s32.totalorder %s199, %s200
    %p212 = scmp.eq.s32.totalorder %s22, 1
    %p213 = por %p211, %p212
    %p215 = scmp.ne.s32.totalorder %s200, %s214
    %p216 = scmp.eq.s32.totalorder %s22, 0
    %p217 = por %p215, %p216
    %s219 = sadd.s32 %s218, 1
    %p222 = scmp.eq.s32.totalorder %s16, 1
    %p223 = scmp.ne.s32.totalorder %s218, %s220
    %p224 = scmp.eq.s32.totalorder %s16, 0
    %p225 = por %p223, %p224
    %p226 = scmp.ne.s32.totalorder %s218, %s220
    %p227 = scmp.eq.s32.totalorder %s21, 1
    %p228 = por %p226, %p227
    %p229 = scmp.ne.s32.totalorder %s220, %s221
    %p230 = scmp.eq.s32.totalorder %s21, 0
    %p231 = por %p229, %p230
    %p232 = scmp.ne.s32.totalorder %s220, %s221
    %p233 = scmp.eq.s32.totalorder %s22, 1
    %p234 = por %p232, %p233
    %p236 = scmp.ne.s32.totalorder %s221, %s235
    %p237 = scmp.eq.s32.totalorder %s22, 0
    %p238 = por %p236, %p237
    %s239 = ssub.s32 %s16, %s23
    %p240 = scmp.eq.s32.totalorder %s239, 0
    %s242 = sadd.s32 %s241, 1
    %s243 = scalar_select %p240, %s241, %s242
    %p246 = pneg %p240
    %p247 = scmp.eq.s32.totalorder %s16, 1
    %p248 = por %p246, %p247
    %p249 = scmp.ne.s32.totalorder %s241, %s244
    %p250 = scmp.eq.s32.totalorder %s16, 0
    %p251 = por %p249, %p250
    %p252 = scmp.ne.s32.totalorder %s241, %s244
    %p253 = scmp.eq.s32.totalorder %s21, 1
    %p254 = por %p252, %p253
    %p255 = scmp.ne.s32.totalorder %s244, %s245
    %p256 = scmp.eq.s32.totalorder %s21, 0
    %p257 = por %p255, %p256
    %p258 = scmp.ne.s32.totalorder %s244, %s245
    %p259 = scmp.eq.s32.totalorder %s22, 1
    %p260 = por %p258, %p259
    %p262 = scmp.ne.s32.totalorder %s245, %s261
    %p263 = scmp.eq.s32.totalorder %s22, 0
    %p264 = por %p262, %p263
    %p265 = scmp.le.s32.totalorder 1, %s16
    %p266 = scmp.lt.s32.totalorder %s16, 3
    %p267 = pnand %p265, %p266
    %p268 = pneg %p267
    // Predicated region
    $region9: #{residual_block_2d.1} parent=5 // pred_check
      _
    $region10: #{residual_block_2d.1} parent=5 // pred_check_branch
      %270 = sbr.rel (%p267) target = $region12
    $region11: #{residual_block_2d.1} parent=5 // pred_region
      %s271 = ssub.s32 %s16, 1
      // Predicated region
      $region13: #{residual_block_2d.1} parent=11 // pred_check
        %p272 = pneg %p63
      $region14: #{residual_block_2d.1} parent=11 // pred_check_branch
        %274 = sbr.rel (%p272) target = $region16
      $region15: #{residual_block_2d.1} parent=11 // pred_region
        _
      $region16: #{residual_block_2d.1} parent=11 // pred_fallthru
        _
      // Predicated region
      $region17: #{residual_block_2d.1} parent=11 // pred_check
        %p275 = pneg %p84
      $region18: #{residual_block_2d.1} parent=11 // pred_check_branch
        %277 = sbr.rel (%p275) target = $region20
      $region19: #{residual_block_2d.1} parent=11 // pred_region
        _
      $region20: #{residual_block_2d.1} parent=11 // pred_fallthru
        _
      // Predicated region
      $region21: #{residual_block_2d.1} parent=11 // pred_check
        %p278 = pneg %p105
      $region22: #{residual_block_2d.1} parent=11 // pred_check_branch
        %280 = sbr.rel (%p278) target = $region24
      $region23: #{residual_block_2d.1} parent=11 // pred_region
        _
      $region24: #{residual_block_2d.1} parent=11 // pred_fallthru
        _
      // Predicated region
      $region25: #{residual_block_2d.1} parent=11 // pred_check
        %p281 = pneg %p126
      $region26: #{residual_block_2d.1} parent=11 // pred_check_branch
        %283 = sbr.rel (%p281) target = $region28
      $region27: #{residual_block_2d.1} parent=11 // pred_region
        _
      $region28: #{residual_block_2d.1} parent=11 // pred_fallthru
        _
      // Predicated region
      $region29: #{residual_block_2d.1} parent=11 // pred_check
        %p284 = pneg %p147
      $region30: #{residual_block_2d.1} parent=11 // pred_check_branch
        %286 = sbr.rel (%p284) target = $region32
      $region31: #{residual_block_2d.1} parent=11 // pred_region
        _
      $region32: #{residual_block_2d.1} parent=11 // pred_fallthru
        _
      // Predicated region
      $region33: #{residual_block_2d.1} parent=11 // pred_check
        %p287 = pneg %p168
      $region34: #{residual_block_2d.1} parent=11 // pred_check_branch
        %289 = sbr.rel (%p287) target = $region36
      $region35: #{residual_block_2d.1} parent=11 // pred_region
        _
      $region36: #{residual_block_2d.1} parent=11 // pred_fallthru
        _
      // Predicated region
      $region37: #{residual_block_2d.1} parent=11 // pred_check
        %p290 = pneg %p189
      $region38: #{residual_block_2d.1} parent=11 // pred_check_branch
        %292 = sbr.rel (%p290) target = $region40
      $region39: #{residual_block_2d.1} parent=11 // pred_region
        _
      $region40: #{residual_block_2d.1} parent=11 // pred_fallthru
        _
      // Predicated region
      $region41: #{residual_block_2d.1} parent=11 // pred_check
        %p293 = pneg %p210
      $region42: #{residual_block_2d.1} parent=11 // pred_check_branch
        %295 = sbr.rel (%p293) target = $region44
      $region43: #{residual_block_2d.1} parent=11 // pred_region
        _
      $region44: #{residual_block_2d.1} parent=11 // pred_fallthru
        _
      // Predicated region
      $region45: #{residual_block_2d.1} parent=11 // pred_check
        %p296 = pneg %p231
      $region46: #{residual_block_2d.1} parent=11 // pred_check_branch
        %298 = sbr.rel (%p296) target = $region48
      $region47: #{residual_block_2d.1} parent=11 // pred_region
        _
      $region48: #{residual_block_2d.1} parent=11 // pred_fallthru
        _
    $region12: #{residual_block_2d.1} parent=5 // pred_fallthru
      _
    %p299 = scmp.lt.s32.totalorder %s16, 2
    // Predicated region
    $region49: #{residual_block_2d.1} parent=5 // pred_check
      %p300 = pneg %p299
    $region50: #{residual_block_2d.1} parent=5 // pred_check_branch
      %302 = sbr.rel (%p300) target = $region52
    $region51: #{residual_block_2d.1} parent=5 // pred_region
      // Predicated region
      $region53: #{residual_block_2d.1} parent=51 // pred_check
        %p303 = pneg %p36
      $region54: #{residual_block_2d.1} parent=51 // pred_check_branch
        %305 = sbr.rel (%p303) target = $region56
      $region55: #{residual_block_2d.1} parent=51 // pred_region
        %p306 = scmp.lt.s32.totalorder %s16, 1
        %s307 = scalar_select %p306, %s16, 1
        %s308 = smul.addr %s307, 18
        %s309 = smul.addr %s308, 4
        %s310 = scalar_lea.vmem %s0, %s309
      $region56: #{residual_block_2d.1} parent=51 // pred_fallthru
        _
    $region52: #{residual_block_2d.1} parent=5 // pred_fallthru
      _
    %p311 = scmp.le.s32.totalorder 1, %s16
    %p312 = scmp.lt.s32.totalorder %s16, 3
    %p313 = pnand %p311, %p312
    %p314 = pneg %p313
    // Predicated region
    $region57: #{residual_block_2d.1} parent=5 // pred_check
      _
    $region58: #{residual_block_2d.1} parent=5 // pred_check_branch
      %316 = sbr.rel (%p313) target = $region60
    $region59: #{residual_block_2d.1} parent=5 // pred_region
      %s317 = ssub.s32 %s16, 1
      %p318 = scmp.lt.s32.totalorder %s21, 1
      %s319 = scalar_select %p318, %s21, 1
      %s320 = smul.addr %s319, 18
      %s321 = smul.addr %s320, 4
      %s322 = scalar_lea.vmem %s0, %s321
      %p323 = pneg %p42
      %p324 = pneg %p39
      %p325 = pneg %p63
      %p326 = pneg %p60
      %p327 = pneg %p84
      %p328 = pneg %p81
      %p329 = pneg %p105
      %p330 = pneg %p102
      %p331 = pneg %p126
      %p332 = pneg %p123
      %p333 = pneg %p147
      %p334 = pneg %p144
      %p335 = pneg %p168
      %p336 = pneg %p165
      %p337 = pneg %p189
      %p338 = pneg %p186
      %p339 = pneg %p210
      %p340 = pneg %p207
      %p341 = pneg %p231
      %p342 = pneg %p228
      %p343 = pneg %p257
      %p344 = pneg %p254
      %p345 = scmp.lt.s32.totalorder %s21, 1
      %s346 = scalar_select %p345, %s21, 1
      %s347 = smul.addr %s346, 8
      %s348 = smul.addr %s347, 4
      %s349 = scalar_lea.vmem %s10, %s348
      %p350 = scmp.lt.s32.totalorder %s21, 1
      %s351 = scalar_select %p350, %s21, 1
      %s352 = smul.addr %s351, 18
      %s353 = smul.addr %s352, 4
      %s354 = scalar_lea.vmem %s0, %s353
      %p355 = scmp.lt.s32.totalorder %s21, 1
      %s356 = scalar_select %p355, %s21, 1
      %s357 = smul.addr %s356, 8
      %s358 = smul.addr %s357, 4
      %s359 = scalar_lea.vmem %s10, %s358
      %v361 = vld [vmem:[%s354] sm:$0xf]
      %v362 = vld [vmem:[%s354 + $0x4] sm:$0xf]
      %v363 = vld [vmem:[%s354 + $0x8] sm:$0xf]
      %v364 = vld [vmem:[%s354 + $0xc] sm:$0xf]
      %v365 = vld [vmem:[%s354 + $0x10] sm:$0xf]
      %v366 = vld [vmem:[%s354 + $0x14] sm:$0xf]
      %v367 = vld [vmem:[%s354 + $0x18] sm:$0xf]
      %v368 = vld [vmem:[%s354 + $0x1c] sm:$0xf]
      %v369 = vld [vmem:[%s1] sm:$0xf]
      %v370 = vld [vmem:[%s1 + $0x4] sm:$0xf]
      %v371 = vld [vmem:[%s1 + $0x8] sm:$0xf]
      %v372 = vld [vmem:[%s354 + $0x24] sm:$0xf]
      %v373 = vld [vmem:[%s354 + $0x28] sm:$0xf]
      %v374 = vld [vmem:[%s354 + $0x2c] sm:$0xf]
      %v375 = vld [vmem:[%s354 + $0x30] sm:$0xf]
      %v376 = vld [vmem:[%s354 + $0x34] sm:$0xf]
      %v377 = vld [vmem:[%s354 + $0x38] sm:$0xf]
      %v378 = vld [vmem:[%s354 + $0x3c] sm:$0xf]
      %v379 = vld [vmem:[%s354 + $0x40] sm:$0xf]
      %s380 = scalar_lea.vmem %s1, 12
      %v381 = vld [vmem:[%s380] sm:$0xf]
      %v382 = vld [vmem:[%s380 + $0x4] sm:$0xf]
      %v383 = vld [vmem:[%s380 + $0x8] sm:$0xf]
      %v392 = vunpack.c.l.b16 %v372
      %v393 = vunpack.c.l.b16 %v373
      %v394 = vunpack.c.l.b16 %v374
      %v395 = vunpack.c.l.b16 %v375
      %v396 = vunpack.c.l.b16 %v376
      %v397 = vunpack.c.l.b16 %v377
      %v398 = vunpack.c.l.b16 %v378
      %v399 = vunpack.c.l.b16 %v379
      %v400 = vpack.c.b16 %v393, %v392
      %v401 = vpack.c.b16 %v395, %v394
      %v402 = vpack.c.b16 %v397, %v396
      %v403 = vpack.c.b16 %v399, %v398
      %v407 = vunpack.c.l.b16 %v381
      %v408 = vunpack.c.l.b16 %v382
      %v409 = vunpack.c.l.b16 %v383
      %v410 = vpack.c.b16 %v408, %v407
      %v411 = vpack.c.b16 %v409, %v409
      %vm413 = vcmask 195584
      %v415 = vsel %vm413, %v400, 0
      %v418 = vsel %vm413, %v401, 0
      %v421 = vsel %vm413, %v402, 0
      %v424 = vsel %vm413, %v403, 0
      %vm426 = vcmask 1043456
      %v428 = vsel %vm426, %v411, 0
      %430 = vmatprep.subr.bf16.mxu0 0
      %431 = vmatpush1.bf16.msra.mxu0 0
      %432 = vmatprep.subr.bf16.mxu0 0
      %433 = vmatpush1.bf16.msra.mxu0 0
      %434 = vmatprep.subr.bf16.mxu0 0
      %435 = vmatpush1.bf16.msra.mxu0 0
      %436 = vmatprep.subr.bf16.mxu0 0
      %437 = vmatpush1.bf16.msra.mxu0 0
      %438 = vmatprep.subr.bf16.mxu0 0
      %439 = vmatpush1.bf16.msra.mxu0 0
      %440 = vmatprep.subr.bf16.mxu0 0
      %441 = vmatpush1.bf16.msra.mxu0 0
      %442 = vmatprep.subr.bf16.mxu0 0
      %443 = vmatpush1.bf16.msra.mxu0 %v428
      %444 = vmatprep.subr.bf16.mxu0 0
      %445 = vmatpush1.bf16.msra.mxu0 %v410
      %446 = vmatprep.subr.bf16.mxu0 0
      %447 = vmatpush2.bf16.msra.mxu0 0
      %448 = vmatprep.subr.bf16.mxu0 0
      %449 = vmatpush2.bf16.msra.mxu0 0
      %450 = vmatprep.subr.bf16.mxu0 0
      %451 = vmatpush2.bf16.msra.mxu0 0
      %452 = vmatprep.subr.bf16.mxu0 0
      %453 = vmatpush2.bf16.msra.mxu0 0
      %454 = vmatprep.subr.bf16.mxu0 0
      %455 = vmatpush2.bf16.msra.mxu0 0
      %456 = vmatprep.subr.bf16.mxu0 0
      %457 = vmatpush2.bf16.msra.mxu0 0
      %458 = vmatprep.subr.bf16.mxu0 0
      %459 = vmatpush2.bf16.msra.mxu0 0
      %460 = vmatprep.subr.bf16.mxu0 0
      %461 = vmatpush2.bf16.msra.mxu0 0
      %462 = vmatprep.mubr.bf16.mxu0 0
      %463 = vmatmul.mubr.bf16.gmra.mxu0 %v415
      %v464 = vpop.f32.mrf.mxu0
      %v465 = vadd.f32 0.0, %v464
      %v466 = vpop.f32.mrf.mxu0
      %v467 = vpop.f32.mrf.mxu0
      %v468 = vadd.f32 0.0, %v467
      %v469 = vpop.f32.mrf.mxu0
      %470 = vmatprep.mubr.bf16.mxu0 0
      %471 = vmatmul.mubr.bf16.gmra.mxu0 %v418
      %v472 = vpop.f32.mrf.mxu0
      %v473 = vadd.f32 0.0, %v472
      %v474 = vpop.f32.mrf.mxu0
      %v475 = vpop.f32.mrf.mxu0
      %v476 = vadd.f32 0.0, %v475
      %v477 = vpop.f32.mrf.mxu0
      %478 = vmatprep.mubr.bf16.mxu0 0
      %479 = vmatmul.mubr.bf16.gmra.mxu0 %v421
      %v480 = vpop.f32.mrf.mxu0
      %v481 = vadd.f32 0.0, %v480
      %v482 = vpop.f32.mrf.mxu0
      %v483 = vpop.f32.mrf.mxu0
      %v484 = vadd.f32 0.0, %v483
      %v485 = vpop.f32.mrf.mxu0
      %486 = vmatprep.mubr.bf16.mxu0 0
      %487 = vmatmul.mubr.bf16.gmra.mxu0 %v424
      %v488 = vpop.f32.mrf.mxu0
      %v489 = vadd.f32 0.0, %v488
      %v490 = vpop.f32.mrf.mxu0
      %v491 = vpop.f32.mrf.mxu0
      %v492 = vadd.f32 0.0, %v491
      %v493 = vpop.f32.mrf.mxu0
      %494 = vdwg.mxu0
      %v503 = vunpack.c.l.b16 %v361
      %v504 = vunpack.c.l.b16 %v362
      %v505 = vunpack.c.l.b16 %v363
      %v506 = vunpack.c.l.b16 %v364
      %v507 = vunpack.c.l.b16 %v365
      %v508 = vunpack.c.l.b16 %v366
      %v509 = vunpack.c.l.b16 %v367
      %v510 = vunpack.c.l.b16 %v368
      %v511 = vpack.c.b16 %v504, %v503
      %v512 = vpack.c.b16 %v506, %v505
      %v513 = vpack.c.b16 %v508, %v507
      %v514 = vpack.c.b16 %v510, %v509
      %v518 = vunpack.c.l.b16 %v369
      %v519 = vunpack.c.l.b16 %v370
      %v520 = vunpack.c.l.b16 %v371
      %v521 = vpack.c.b16 %v519, %v518
      %v522 = vpack.c.b16 %v520, %v520
      %v525 = vsel %vm413, %v511, 0
      %v528 = vsel %vm413, %v512, 0
      %v531 = vsel %vm413, %v513, 0
      %v534 = vsel %vm413, %v514, 0
      %v537 = vsel %vm426, %v522, 0
      %539 = vmatprep.subr.bf16.mxu0 0
      %540 = vmatpush1.bf16.msra.mxu0 0
      %541 = vmatprep.subr.bf16.mxu0 0
      %542 = vmatpush1.bf16.msra.mxu0 0
      %543 = vmatprep.subr.bf16.mxu0 0
      %544 = vmatpush1.bf16.msra.mxu0 0
      %545 = vmatprep.subr.bf16.mxu0 0
      %546 = vmatpush1.bf16.msra.mxu0 0
      %547 = vmatprep.subr.bf16.mxu0 0
      %548 = vmatpush1.bf16.msra.mxu0 0
      %549 = vmatprep.subr.bf16.mxu0 0
      %550 = vmatpush1.bf16.msra.mxu0 0
      %551 = vmatprep.subr.bf16.mxu0 0
      %552 = vmatpush1.bf16.msra.mxu0 %v537
      %553 = vmatprep.subr.bf16.mxu0 0
      %554 = vmatpush1.bf16.msra.mxu0 %v521
      %555 = vmatprep.subr.bf16.mxu0 0
      %556 = vmatpush2.bf16.msra.mxu0 0
      %557 = vmatprep.subr.bf16.mxu0 0
      %558 = vmatpush2.bf16.msra.mxu0 0
      %559 = vmatprep.subr.bf16.mxu0 0
      %560 = vmatpush2.bf16.msra.mxu0 0
      %561 = vmatprep.subr.bf16.mxu0 0
      %562 = vmatpush2.bf16.msra.mxu0 0
      %563 = vmatprep.subr.bf16.mxu0 0
      %564 = vmatpush2.bf16.msra.mxu0 0
      %565 = vmatprep.subr.bf16.mxu0 0
      %566 = vmatpush2.bf16.msra.mxu0 0
      %567 = vmatprep.subr.bf16.mxu0 0
      %568 = vmatpush2.bf16.msra.mxu0 0
      %569 = vmatprep.subr.bf16.mxu0 0
      %570 = vmatpush2.bf16.msra.mxu0 0
      %571 = vmatprep.mubr.bf16.mxu0 0
      %572 = vmatmul.mubr.bf16.gmra.mxu0 %v525
      %v573 = vpop.f32.mrf.mxu0
      %v574 = vadd.f32 %v465, %v573
      %v575 = vpop.f32.mrf.mxu0
      %v576 = vpop.f32.mrf.mxu0
      %v577 = vadd.f32 %v468, %v576
      %v578 = vpop.f32.mrf.mxu0
      %579 = vmatprep.mubr.bf16.mxu0 0
      %580 = vmatmul.mubr.bf16.gmra.mxu0 %v528
      %v581 = vpop.f32.mrf.mxu0
      %v582 = vadd.f32 %v473, %v581
      %v583 = vpop.f32.mrf.mxu0
      %v584 = vpop.f32.mrf.mxu0
      %v585 = vadd.f32 %v476, %v584
      %v586 = vpop.f32.mrf.mxu0
      %587 = vmatprep.mubr.bf16.mxu0 0
      %588 = vmatmul.mubr.bf16.gmra.mxu0 %v531
      %v589 = vpop.f32.mrf.mxu0
      %v590 = vadd.f32 %v481, %v589
      %v591 = vpop.f32.mrf.mxu0
      %v592 = vpop.f32.mrf.mxu0
      %v593 = vadd.f32 %v484, %v592
      %v594 = vpop.f32.mrf.mxu0
      %595 = vmatprep.mubr.bf16.mxu0 0
      %596 = vmatmul.mubr.bf16.gmra.mxu0 %v534
      %v597 = vpop.f32.mrf.mxu0
      %v598 = vadd.f32 %v489, %v597
      %v599 = vpop.f32.mrf.mxu0
      %v600 = vpop.f32.mrf.mxu0
      %v601 = vadd.f32 %v492, %v600
      %v602 = vpop.f32.mrf.mxu0
      %603 = vdwg.mxu0
      %v604 = vld [vmem:[%s354 + $0x4] sm:$0xf]
      %v605 = vld [vmem:[%s354 + $0x8] sm:$0xf]
      %v606 = vld [vmem:[%s354 + $0xc] sm:$0xf]
      %v607 = vld [vmem:[%s354 + $0x10] sm:$0xf]
      %v608 = vld [vmem:[%s354 + $0x14] sm:$0xf]
      %v609 = vld [vmem:[%s354 + $0x18] sm:$0xf]
      %v610 = vld [vmem:[%s354 + $0x1c] sm:$0xf]
      %v611 = vld [vmem:[%s354 + $0x20] sm:$0xf]
      %s612 = scalar_lea.vmem %s1, 24
      %v613 = vld [vmem:[%s612] sm:$0xf]
      %v614 = vld [vmem:[%s612 + $0x4] sm:$0xf]
      %v615 = vld [vmem:[%s612 + $0x8] sm:$0xf]
      %v624 = vunpack.c.l.b16 %v604
      %v625 = vunpack.c.l.b16 %v605
      %v626 = vunpack.c.l.b16 %v606
      %v627 = vunpack.c.l.b16 %v607
      %v628 = vunpack.c.l.b16 %v608
      %v629 = vunpack.c.l.b16 %v609
      %v630 = vunpack.c.l.b16 %v610
      %v631 = vunpack.c.l.b16 %v611
      %v632 = vpack.c.b16 %v625, %v624
      %v633 = vpack.c.b16 %v627, %v626
      %v634 = vpack.c.b16 %v629, %v628
      %v635 = vpack.c.b16 %v631, %v630
      %v639 = vunpack.c.l.b16 %v613
      %v640 = vunpack.c.l.b16 %v614
      %v641 = vunpack.c.l.b16 %v615
      %v642 = vpack.c.b16 %v640, %v639
      %v643 = vpack.c.b16 %v641, %v641
      %v646 = vsel %vm413, %v632, 0
      %v649 = vsel %vm413, %v633, 0
      %v652 = vsel %vm413, %v634, 0
      %v655 = vsel %vm413, %v635, 0
      %v658 = vsel %vm426, %v643, 0
      %660 = vmatprep.subr.bf16.mxu0 0
      %661 = vmatpush1.bf16.msra.mxu0 0
      %662 = vmatprep.subr.bf16.mxu0 0
      %663 = vmatpush1.bf16.msra.mxu0 0
      %664 = vmatprep.subr.bf16.mxu0 0
      %665 = vmatpush1.bf16.msra.mxu0 0
      %666 = vmatprep.subr.bf16.mxu0 0
      %667 = vmatpush1.bf16.msra.mxu0 0
      %668 = vmatprep.subr.bf16.mxu0 0
      %669 = vmatpush1.bf16.msra.mxu0 0
      %670 = vmatprep.subr.bf16.mxu0 0
      %671 = vmatpush1.bf16.msra.mxu0 0
      %672 = vmatprep.subr.bf16.mxu0 0
      %673 = vmatpush1.bf16.msra.mxu0 %v658
      %674 = vmatprep.subr.bf16.mxu0 0
      %675 = vmatpush1.bf16.msra.mxu0 %v642
      %676 = vmatprep.subr.bf16.mxu0 0
      %677 = vmatpush2.bf16.msra.mxu0 0
      %678 = vmatprep.subr.bf16.mxu0 0
      %679 = vmatpush2.bf16.msra.mxu0 0
      %680 = vmatprep.subr.bf16.mxu0 0
      %681 = vmatpush2.bf16.msra.mxu0 0
      %682 = vmatprep.subr.bf16.mxu0 0
      %683 = vmatpush2.bf16.msra.mxu0 0
      %684 = vmatprep.subr.bf16.mxu0 0
      %685 = vmatpush2.bf16.msra.mxu0 0
      %686 = vmatprep.subr.bf16.mxu0 0
      %687 = vmatpush2.bf16.msra.mxu0 0
      %688 = vmatprep.subr.bf16.mxu0 0
      %689 = vmatpush2.bf16.msra.mxu0 0
      %690 = vmatprep.subr.bf16.mxu0 0
      %691 = vmatpush2.bf16.msra.mxu0 0
      %692 = vmatprep.mubr.bf16.mxu0 0
      %693 = vmatmul.mubr.bf16.gmra.mxu0 %v646
      %v694 = vpop.f32.mrf.mxu0
      %v695 = vadd.f32 0.0, %v694
      %v696 = vpop.f32.mrf.mxu0
      %v697 = vpop.f32.mrf.mxu0
      %v698 = vadd.f32 0.0, %v697
      %v699 = vpop.f32.mrf.mxu0
      %700 = vmatprep.mubr.bf16.mxu0 0
      %701 = vmatmul.mubr.bf16.gmra.mxu0 %v649
      %v702 = vpop.f32.mrf.mxu0
      %v703 = vadd.f32 0.0, %v702
      %v704 = vpop.f32.mrf.mxu0
      %v705 = vpop.f32.mrf.mxu0
      %v706 = vadd.f32 0.0, %v705
      %v707 = vpop.f32.mrf.mxu0
      %708 = vmatprep.mubr.bf16.mxu0 0
      %709 = vmatmul.mubr.bf16.gmra.mxu0 %v652
      %v710 = vpop.f32.mrf.mxu0
      %v711 = vadd.f32 0.0, %v710
      %v712 = vpop.f32.mrf.mxu0
      %v713 = vpop.f32.mrf.mxu0
      %v714 = vadd.f32 0.0, %v713
      %v715 = vpop.f32.mrf.mxu0
      %716 = vmatprep.mubr.bf16.mxu0 0
      %717 = vmatmul.mubr.bf16.gmra.mxu0 %v655
      %v718 = vpop.f32.mrf.mxu0
      %v719 = vadd.f32 0.0, %v718
      %v720 = vpop.f32.mrf.mxu0
      %v721 = vpop.f32.mrf.mxu0
      %v722 = vadd.f32 0.0, %v721
      %v723 = vpop.f32.mrf.mxu0
      %724 = vdwg.mxu0
      %v725 = vadd.f32 %v574, %v695
      %v726 = vadd.f32 %v577, %v698
      %v727 = vadd.f32 %v582, %v703
      %v728 = vadd.f32 %v585, %v706
      %v729 = vadd.f32 %v590, %v711
      %v730 = vadd.f32 %v593, %v714
      %v731 = vadd.f32 %v598, %v719
      %v732 = vadd.f32 %v601, %v722
      %v733 = vld [vmem:[%s2] sm:$0x1]
      %v735 = vlaneseq
      %v736 = vshrl.u32 %v735, 7
      %v737 = vsub.s32 0, %v736
      %v738 = vrot.slane %v733, %v737
      %v740 = vmul.f32 %v725, %v738
      %v741 = vmul.f32 %v726, %v738
      %v742 = vmul.f32 %v727, %v738
      %v743 = vmul.f32 %v728, %v738
      %v744 = vmul.f32 %v729, %v738
      %v745 = vmul.f32 %v730, %v738
      %v746 = vmul.f32 %v731, %v738
      %v747 = vmul.f32 %v732, %v738
      %v748 = vld [vmem:[%s3] sm:$0x1]
      %v750 = vlaneseq
      %v751 = vshrl.u32 %v750, 7
      %v752 = vsub.s32 0, %v751
      %v753 = vrot.slane %v748, %v752
      %v755 = vadd.f32 %v740, %v753
      %v756 = vadd.f32 %v741, %v753
      %v757 = vadd.f32 %v742, %v753
      %v758 = vadd.f32 %v743, %v753
      %v759 = vadd.f32 %v744, %v753
      %v760 = vadd.f32 %v745, %v753
      %v761 = vadd.f32 %v746, %v753
      %v762 = vadd.f32 %v747, %v753
      %v763 = vmul.f32 %v755, 0.01
      %v764 = vmul.f32 %v756, 0.01
      %v765 = vmul.f32 %v757, 0.01
      %v766 = vmul.f32 %v758, 0.01
      %v767 = vmul.f32 %v759, 0.01
      %v768 = vmul.f32 %v760, 0.01
      %v769 = vmul.f32 %v761, 0.01
      %v770 = vmul.f32 %v762, 0.01
      %v771 = vmax.f32 %v755, %v763
      %v772 = vmax.f32 %v756, %v764
      %v773 = vmax.f32 %v757, %v765
      %v774 = vmax.f32 %v758, %v766
      %v775 = vmax.f32 %v759, %v767
      %v776 = vmax.f32 %v760, %v768
      %v777 = vmax.f32 %v761, %v769
      %v778 = vmax.f32 %v762, %v770
      %v787 = vrot.slane %v771, 7
      %v788 = vrot.slane %v772, 7
      %v789 = vrot.slane %v773, 7
      %v790 = vrot.slane %v774, 7
      %v791 = vrot.slane %v775, 7
      %v792 = vrot.slane %v776, 7
      %v793 = vrot.slane %v777, 7
      %v794 = vrot.slane %v778, 7
      %vm803 = vcmask 1040384
      %v804 = vsel %vm803, 0.0, %v787
      %v805 = vsel %vm803, 0.0, %v788
      %v806 = vsel %vm803, 0.0, %v789
      %v807 = vsel %vm803, 0.0, %v790
      %v808 = vsel %vm803, 0.0, %v791
      %v809 = vsel %vm803, 0.0, %v792
      %v810 = vsel %vm803, 0.0, %v793
      %v811 = vsel %vm803, 0.0, %v794
      %v812 = vrot.slane %v771, 1
      %v813 = vrot.slane %v772, 1
      %v814 = vrot.slane %v773, 1
      %v815 = vrot.slane %v774, 1
      %v816 = vrot.slane %v775, 1
      %v817 = vrot.slane %v776, 1
      %v818 = vrot.slane %v777, 1
      %v819 = vrot.slane %v778, 1
      %vm828 = vcmask 1046528
      %v829 = vsel %vm828, %v812, 0.0
      %v830 = vsel %vm828, %v813, 0.0
      %v831 = vsel %vm828, %v814, 0.0
      %v832 = vsel %vm828, %v815, 0.0
      %v833 = vsel %vm828, %v816, 0.0
      %v834 = vsel %vm828, %v817, 0.0
      %v835 = vsel %vm828, %v818, 0.0
      %v836 = vsel %vm828, %v819, 0.0
      %837 = vst [vmem:[#allocation2] sm:$0xff] 0
      %838 = vst [vmem:[#allocation2 + $0x8] sm:$0xf] 0
      %839 = vst [vmem:[#allocation2 + $0x6c] sm:$0xff] 0
      %840 = vst [vmem:[#allocation2 + $0x74] sm:$0xf] 0
      %v841 = vpack.c.bf16 %v805, %v804
      %v842 = vpack.c.bf16 %v807, %v806
      %v843 = vpack.c.bf16 %v809, %v808
      %v844 = vpack.c.bf16 %v811, %v810
      %v849 = vunpack.c.l.b16 %v841
      %v850 = vunpack.c.h.b16 %v841
      %v851 = vunpack.c.l.b16 %v842
      %v852 = vunpack.c.h.b16 %v842
      %v853 = vunpack.c.l.b16 %v843
      %v854 = vunpack.c.h.b16 %v843
      %v855 = vunpack.c.l.b16 %v844
      %v856 = vunpack.c.h.b16 %v844
      %v857 = vpack.c.b16 %v849, %v849
      %v858 = vpack.c.b16 %v850, %v850
      %v859 = vpack.c.b16 %v851, %v851
      %v860 = vpack.c.b16 %v852, %v852
      %v861 = vpack.c.b16 %v853, %v853
      %v862 = vpack.c.b16 %v854, %v854
      %v863 = vpack.c.b16 %v855, %v855
      %v864 = vpack.c.b16 %v856, %v856
      %873 = vst [vmem:[#allocation2 + $0xc] sm:$0xf] %v857
      %874 = vst [vmem:[#allocation2 + $0x18] sm:$0xf] %v858
      %875 = vst [vmem:[#allocation2 + $0x24] sm:$0xf] %v859
      %876 = vst [vmem:[#allocation2 + $0x30] sm:$0xf] %v860
      %877 = vst [vmem:[#allocation2 + $0x3c] sm:$0xf] %v861
      %878 = vst [vmem:[#allocation2 + $0x48] sm:$0xf] %v862
      %879 = vst [vmem:[#allocation2 + $0x54] sm:$0xf] %v863
      %880 = vst [vmem:[#allocation2 + $0x60] sm:$0xf] %v864
      %v881 = vpack.c.bf16 %v772, %v771
      %v882 = vpack.c.bf16 %v774, %v773
      %v883 = vpack.c.bf16 %v776, %v775
      %v884 = vpack.c.bf16 %v778, %v777
      %v889 = vunpack.c.l.b16 %v881
      %v890 = vunpack.c.h.b16 %v881
      %v891 = vunpack.c.l.b16 %v882
      %v892 = vunpack.c.h.b16 %v882
      %v893 = vunpack.c.l.b16 %v883
      %v894 = vunpack.c.h.b16 %v883
      %v895 = vunpack.c.l.b16 %v884
      %v896 = vunpack.c.h.b16 %v884
      %v897 = vpack.c.b16 %v889, %v889
      %v898 = vpack.c.b16 %v890, %v890
      %v899 = vpack.c.b16 %v891, %v891
      %v900 = vpack.c.b16 %v892, %v892
      %v901 = vpack.c.b16 %v893, %v893
      %v902 = vpack.c.b16 %v894, %v894
      %v903 = vpack.c.b16 %v895, %v895
      %v904 = vpack.c.b16 %v896, %v896
      %913 = vst [vmem:[#allocation2 + $0x10] sm:$0xf] %v897
      %914 = vst [vmem:[#allocation2 + $0x1c] sm:$0xf] %v898
      %915 = vst [vmem:[#allocation2 + $0x28] sm:$0xf] %v899
      %916 = vst [vmem:[#allocation2 + $0x34] sm:$0xf] %v900
      %917 = vst [vmem:[#allocation2 + $0x40] sm:$0xf] %v901
      %918 = vst [vmem:[#allocation2 + $0x4c] sm:$0xf] %v902
      %919 = vst [vmem:[#allocation2 + $0x58] sm:$0xf] %v903
      %920 = vst [vmem:[#allocation2 + $0x64] sm:$0xf] %v904
      %v921 = vpack.c.bf16 %v830, %v829
      %v922 = vpack.c.bf16 %v832, %v831
      %v923 = vpack.c.bf16 %v834, %v833
      %v924 = vpack.c.bf16 %v836, %v835
      %v929 = vunpack.c.l.b16 %v921
      %v930 = vunpack.c.h.b16 %v921
      %v931 = vunpack.c.l.b16 %v922
      %v932 = vunpack.c.h.b16 %v922
      %v933 = vunpack.c.l.b16 %v923
      %v934 = vunpack.c.h.b16 %v923
      %v935 = vunpack.c.l.b16 %v924
      %v936 = vunpack.c.h.b16 %v924
      %v937 = vpack.c.b16 %v929, %v929
      %v938 = vpack.c.b16 %v930, %v930
      %v939 = vpack.c.b16 %v931, %v931
      %v940 = vpack.c.b16 %v932, %v932
      %v941 = vpack.c.b16 %v933, %v933
      %v942 = vpack.c.b16 %v934, %v934
      %v943 = vpack.c.b16 %v935, %v935
      %v944 = vpack.c.b16 %v936, %v936
      %953 = vst [vmem:[#allocation2 + $0x14] sm:$0xf] %v937
      %954 = vst [vmem:[#allocation2 + $0x20] sm:$0xf] %v938
      %955 = vst [vmem:[#allocation2 + $0x2c] sm:$0xf] %v939
      %956 = vst [vmem:[#allocation2 + $0x38] sm:$0xf] %v940
      %957 = vst [vmem:[#allocation2 + $0x44] sm:$0xf] %v941
      %958 = vst [vmem:[#allocation2 + $0x50] sm:$0xf] %v942
      %959 = vst [vmem:[#allocation2 + $0x5c] sm:$0xf] %v943
      %960 = vst [vmem:[#allocation2 + $0x68] sm:$0xf] %v944
      %v961 = vld [vmem:[#allocation2] sm:$0xff]
      %v962 = vld [vmem:[#allocation2 + $0x8] sm:$0xf]
      %v963 = vld [vmem:[#allocation2 + $0xc] sm:$0xff]
      %v964 = vld [vmem:[#allocation2 + $0x14] sm:$0xf]
      %v965 = vld [vmem:[#allocation2 + $0x18] sm:$0xff]
      %v966 = vld [vmem:[#allocation2 + $0x20] sm:$0xf]
      %v967 = vld [vmem:[#allocation2 + $0x24] sm:$0xff]
      %v968 = vld [vmem:[#allocation2 + $0x2c] sm:$0xf]
      %v969 = vld [vmem:[#allocation2 + $0x30] sm:$0xff]
      %v970 = vld [vmem:[#allocation2 + $0x38] sm:$0xf]
      %v971 = vld [vmem:[#allocation2 + $0x3c] sm:$0xff]
      %v972 = vld [vmem:[#allocation2 + $0x44] sm:$0xf]
      %v973 = vld [vmem:[#allocation2 + $0x48] sm:$0xff]
      %v974 = vld [vmem:[#allocation2 + $0x50] sm:$0xf]
      %v975 = vld [vmem:[#allocation2 + $0x54] sm:$0xff]
      %v976 = vld [vmem:[#allocation2 + $0x5c] sm:$0xf]
      %v977 = vld [vmem:[%s4] sm:$0xf]
      %v978 = vld [vmem:[%s4 + $0x4] sm:$0xf]
      %v979 = vld [vmem:[%s4 + $0x8] sm:$0xf]
      %v980 = vld [vmem:[%s4 + $0xc] sm:$0xf]
      %v981 = vld [vmem:[%s4 + $0x10] sm:$0xf]
      %v982 = vld [vmem:[%s4 + $0x14] sm:$0xf]
      %v983 = vld [vmem:[%s4 + $0x18] sm:$0xf]
      %v984 = vld [vmem:[%s4 + $0x1c] sm:$0xf]
      %v985 = vld [vmem:[%s4 + $0x20] sm:$0xf]
      %v986 = vld [vmem:[%s4 + $0x24] sm:$0xf]
      %v987 = vld [vmem:[%s4 + $0x28] sm:$0xf]
      %v988 = vld [vmem:[%s4 + $0x2c] sm:$0xf]
      %v989 = vld [vmem:[%s4 + $0x30] sm:$0xf]
      %v990 = vld [vmem:[%s4 + $0x34] sm:$0xf]
      %v991 = vld [vmem:[%s4 + $0x38] sm:$0xf]
      %v992 = vld [vmem:[%s4 + $0x3c] sm:$0xf]
      %v993 = vld [vmem:[%s4 + $0x40] sm:$0xf]
      %v994 = vld [vmem:[%s4 + $0x44] sm:$0xf]
      %v995 = vld [vmem:[%s4 + $0x48] sm:$0xf]
      %v996 = vld [vmem:[%s4 + $0x4c] sm:$0xf]
      %v997 = vld [vmem:[%s4 + $0x50] sm:$0xf]
      %v998 = vld [vmem:[%s4 + $0x54] sm:$0xf]
      %v999 = vld [vmem:[%s4 + $0x58] sm:$0xf]
      %v1000 = vld [vmem:[%s4 + $0x5c] sm:$0xf]
      %v1001 = vld [vmem:[%s4 + $0x60] sm:$0xf]
      %v1002 = vld [vmem:[%s4 + $0x64] sm:$0xf]
      %v1003 = vld [vmem:[%s4 + $0x68] sm:$0xf]
      %v1004 = vld [vmem:[%s4 + $0x6c] sm:$0xf]
      %v1005 = vld [vmem:[%s4 + $0x70] sm:$0xf]
      %v1006 = vld [vmem:[%s4 + $0x74] sm:$0xf]
      %v1007 = vld [vmem:[%s4 + $0x78] sm:$0xf]
      %v1008 = vld [vmem:[%s4 + $0x7c] sm:$0xf]
      %v1009 = vld [vmem:[%s4 + $0x80] sm:$0xf]
      %v1010 = vld [vmem:[%s4 + $0x84] sm:$0xf]
      %v1011 = vld [vmem:[%s4 + $0x88] sm:$0xf]
      %v1012 = vld [vmem:[%s4 + $0x8c] sm:$0xf]
      %v1013 = vld [vmem:[%s4 + $0x90] sm:$0xf]
      %v1014 = vld [vmem:[%s4 + $0x94] sm:$0xf]
      %v1015 = vld [vmem:[%s4 + $0x98] sm:$0xf]
      %v1016 = vld [vmem:[%s4 + $0x9c] sm:$0xf]
      %v1017 = vld [vmem:[%s4 + $0xa0] sm:$0xf]
      %v1018 = vld [vmem:[%s4 + $0xa4] sm:$0xf]
      %v1019 = vld [vmem:[%s4 + $0xa8] sm:$0xf]
      %v1020 = vld [vmem:[%s4 + $0xac] sm:$0xf]
      %v1021 = vld [vmem:[%s4 + $0xb0] sm:$0xf]
      %v1022 = vld [vmem:[%s4 + $0xb4] sm:$0xf]
      %v1023 = vld [vmem:[%s4 + $0xb8] sm:$0xf]
      %v1024 = vld [vmem:[%s4 + $0xbc] sm:$0xf]
      %v1025 = vld [vmem:[#allocation2 + $0x60] sm:$0xff]
      %v1026 = vld [vmem:[#allocation2 + $0x68] sm:$0xf]
      %s1027 = scalar_lea.vmem %s4, 192
      %v1028 = vld [vmem:[%s1027] sm:$0xf]
      %v1029 = vld [vmem:[%s1027 + $0x4] sm:$0xf]
      %v1030 = vld [vmem:[%s1027 + $0x8] sm:$0xf]
      %v1031 = vld [vmem:[%s1027 + $0xc] sm:$0xf]
      %v1032 = vld [vmem:[%s1027 + $0x10] sm:$0xf]
      %v1033 = vld [vmem:[%s1027 + $0x14] sm:$0xf]
      %v1034 = vld [vmem:[%s1027 + $0x18] sm:$0xf]
      %v1035 = vld [vmem:[%s1027 + $0x1c] sm:$0xf]
      %v1036 = vld [vmem:[%s1027 + $0x20] sm:$0xf]
      %v1037 = vld [vmem:[%s1027 + $0x24] sm:$0xf]
      %v1038 = vld [vmem:[%s1027 + $0x28] sm:$0xf]
      %v1039 = vld [vmem:[%s1027 + $0x2c] sm:$0xf]
      %v1040 = vld [vmem:[%s1027 + $0x30] sm:$0xf]
      %v1041 = vld [vmem:[%s1027 + $0x34] sm:$0xf]
      %v1042 = vld [vmem:[%s1027 + $0x38] sm:$0xf]
      %v1043 = vld [vmem:[%s1027 + $0x3c] sm:$0xf]
      %v1044 = vld [vmem:[%s1027 + $0x40] sm:$0xf]
      %v1045 = vld [vmem:[%s1027 + $0x44] sm:$0xf]
      %v1046 = vld [vmem:[%s1027 + $0x48] sm:$0xf]
      %v1047 = vld [vmem:[%s1027 + $0x4c] sm:$0xf]
      %v1048 = vld [vmem:[%s1027 + $0x50] sm:$0xf]
      %v1049 = vld [vmem:[%s1027 + $0x54] sm:$0xf]
      %v1050 = vld [vmem:[%s1027 + $0x58] sm:$0xf]
      %v1051 = vld [vmem:[%s1027 + $0x5c] sm:$0xf]
      %v1052 = vld [vmem:[%s1027 + $0x60] sm:$0xf]
      %v1053 = vld [vmem:[%s1027 + $0x64] sm:$0xf]
      %v1054 = vld [vmem:[%s1027 + $0x68] sm:$0xf]
      %v1055 = vld [vmem:[%s1027 + $0x6c] sm:$0xf]
      %v1056 = vld [vmem:[%s1027 + $0x70] sm:$0xf]
      %v1057 = vld [vmem:[%s1027 + $0x74] sm:$0xf]
      %v1058 = vld [vmem:[%s1027 + $0x78] sm:$0xf]
      %v1059 = vld [vmem:[%s1027 + $0x7c] sm:$0xf]
      %v1060 = vld [vmem:[%s1027 + $0x80] sm:$0xf]
      %v1061 = vld [vmem:[%s1027 + $0x84] sm:$0xf]
      %v1062 = vld [vmem:[%s1027 + $0x88] sm:$0xf]
      %v1063 = vld [vmem:[%s1027 + $0x8c] sm:$0xf]
      %v1064 = vld [vmem:[%s1027 + $0x90] sm:$0xf]
      %v1065 = vld [vmem:[%s1027 + $0x94] sm:$0xf]
      %v1066 = vld [vmem:[%s1027 + $0x98] sm:$0xf]
      %v1067 = vld [vmem:[%s1027 + $0x9c] sm:$0xf]
      %v1068 = vld [vmem:[%s1027 + $0xa0] sm:$0xf]
      %v1069 = vld [vmem:[%s1027 + $0xa4] sm:$0xf]
      %v1070 = vld [vmem:[%s1027 + $0xa8] sm:$0xf]
      %v1071 = vld [vmem:[%s1027 + $0xac] sm:$0xf]
      %v1072 = vld [vmem:[%s1027 + $0xb0] sm:$0xf]
      %v1073 = vld [vmem:[%s1027 + $0xb4] sm:$0xf]
      %v1074 = vld [vmem:[%s1027 + $0xb8] sm:$0xf]
      %v1075 = vld [vmem:[%s1027 + $0xbc] sm:$0xf]
      %v1092 = vunpack.c.l.b16 %v963
      %v1093 = vunpack.c.h.b16 %v963
      %v1094 = vunpack.c.l.b16 %v964
      %v1095 = vunpack.c.l.b16 %v965
      %v1096 = vunpack.c.h.b16 %v965
      %v1097 = vunpack.c.l.b16 %v966
      %v1098 = vunpack.c.l.b16 %v967
      %v1099 = vunpack.c.h.b16 %v967
      %v1100 = vunpack.c.l.b16 %v968
      %v1101 = vunpack.c.l.b16 %v969
      %v1102 = vunpack.c.h.b16 %v969
      %v1103 = vunpack.c.l.b16 %v970
      %v1104 = vunpack.c.l.b16 %v971
      %v1105 = vunpack.c.h.b16 %v971
      %v1106 = vunpack.c.l.b16 %v972
      %v1107 = vunpack.c.l.b16 %v973
      %v1108 = vunpack.c.h.b16 %v973
      %v1109 = vunpack.c.l.b16 %v974
      %v1110 = vunpack.c.l.b16 %v975
      %v1111 = vunpack.c.h.b16 %v975
      %v1112 = vunpack.c.l.b16 %v976
      %v1113 = vunpack.c.l.b16 %v1025
      %v1114 = vunpack.c.h.b16 %v1025
      %v1115 = vunpack.c.l.b16 %v1026
      %v1116 = vpack.c.b16 %v1095, %v1092
      %v1117 = vpack.c.b16 %v1096, %v1093
      %v1118 = vpack.c.b16 %v1097, %v1094
      %v1119 = vpack.c.b16 %v1101, %v1098
      %v1120 = vpack.c.b16 %v1102, %v1099
      %v1121 = vpack.c.b16 %v1103, %v1100
      %v1122 = vpack.c.b16 %v1107, %v1104
      %v1123 = vpack.c.b16 %v1108, %v1105
      %v1124 = vpack.c.b16 %v1109, %v1106
      %v1125 = vpack.c.b16 %v1113, %v1110
      %v1126 = vpack.c.b16 %v1114, %v1111
      %v1127 = vpack.c.b16 %v1115, %v1112
      %v1188 = vunpack.c.l.b16 %v1028
      %v1189 = vunpack.c.l.b16 %v1029
      %v1190 = vunpack.c.l.b16 %v1030
      %v1191 = vunpack.c.l.b16 %v1031
      %v1192 = vunpack.c.l.b16 %v1032
      %v1193 = vunpack.c.l.b16 %v1033
      %v1194 = vunpack.c.l.b16 %v1034
      %v1195 = vunpack.c.l.b16 %v1035
      %v1196 = vunpack.c.l.b16 %v1036
      %v1197 = vunpack.c.l.b16 %v1037
      %v1198 = vunpack.c.l.b16 %v1038
      %v1199 = vunpack.c.l.b16 %v1039
      %v1200 = vunpack.c.l.b16 %v1040
      %v1201 = vunpack.c.l.b16 %v1041
      %v1202 = vunpack.c.l.b16 %v1042
      %v1203 = vunpack.c.l.b16 %v1043
      %v1204 = vunpack.c.l.b16 %v1044
      %v1205 = vunpack.c.l.b16 %v1045
      %v1206 = vunpack.c.l.b16 %v1046
      %v1207 = vunpack.c.l.b16 %v1047
      %v1208 = vunpack.c.l.b16 %v1048
      %v1209 = vunpack.c.l.b16 %v1049
      %v1210 = vunpack.c.l.b16 %v1050
      %v1211 = vunpack.c.l.b16 %v1051
      %v1212 = vunpack.c.l.b16 %v1052
      %v1213 = vunpack.c.l.b16 %v1053
      %v1214 = vunpack.c.l.b16 %v1054
      %v1215 = vunpack.c.l.b16 %v1055
      %v1216 = vunpack.c.l.b16 %v1056
      %v1217 = vunpack.c.l.b16 %v1057
      %v1218 = vunpack.c.l.b16 %v1058
      %v1219 = vunpack.c.l.b16 %v1059
      %v1220 = vunpack.c.l.b16 %v1060
      %v1221 = vunpack.c.l.b16 %v1061
      %v1222 = vunpack.c.l.b16 %v1062
      %v1223 = vunpack.c.l.b16 %v1063
      %v1224 = vunpack.c.l.b16 %v1064
      %v1225 = vunpack.c.l.b16 %v1065
      %v1226 = vunpack.c.l.b16 %v1066
      %v1227 = vunpack.c.l.b16 %v1067
      %v1228 = vunpack.c.l.b16 %v1068
      %v1229 = vunpack.c.l.b16 %v1069
      %v1230 = vunpack.c.l.b16 %v1070
      %v1231 = vunpack.c.l.b16 %v1071
      %v1232 = vunpack.c.l.b16 %v1072
      %v1233 = vunpack.c.l.b16 %v1073
      %v1234 = vunpack.c.l.b16 %v1074
      %v1235 = vunpack.c.l.b16 %v1075
      %v1236 = vpack.c.b16 %v1189, %v1188
      %v1237 = vpack.c.b16 %v1191, %v1190
      %v1238 = vpack.c.b16 %v1193, %v1192
      %v1239 = vpack.c.b16 %v1195, %v1194
      %v1240 = vpack.c.b16 %v1197, %v1196
      %v1241 = vpack.c.b16 %v1199, %v1198
      %v1242 = vpack.c.b16 %v1201, %v1200
      %v1243 = vpack.c.b16 %v1203, %v1202
      %v1244 = vpack.c.b16 %v1205, %v1204
      %v1245 = vpack.c.b16 %v1207, %v1206
      %v1246 = vpack.c.b16 %v1209, %v1208
      %v1247 = vpack.c.b16 %v1211, %v1210
      %v1248 = vpack.c.b16 %v1213, %v1212
      %v1249 = vpack.c.b16 %v1215, %v1214
      %v1250 = vpack.c.b16 %v1217, %v1216
      %v1251 = vpack.c.b16 %v1219, %v1218
      %v1252 = vpack.c.b16 %v1221, %v1220
      %v1253 = vpack.c.b16 %v1223, %v1222
      %v1254 = vpack.c.b16 %v1225, %v1224
      %v1255 = vpack.c.b16 %v1227, %v1226
      %v1256 = vpack.c.b16 %v1229, %v1228
      %v1257 = vpack.c.b16 %v1231, %v1230
      %v1258 = vpack.c.b16 %v1233, %v1232
      %v1259 = vpack.c.b16 %v1235, %v1234
      %1284 = vmatprep.subr.bf16.mxu0 0
      %1285 = vmatpush1.bf16.msra.mxu0 %v1243
      %1286 = vmatprep.subr.bf16.mxu0 0
      %1287 = vmatpush1.bf16.msra.mxu0 %v1242
      %1288 = vmatprep.subr.bf16.mxu0 0
      %1289 = vmatpush1.bf16.msra.mxu0 %v1241
      %1290 = vmatprep.subr.bf16.mxu0 0
      %1291 = vmatpush1.bf16.msra.mxu0 %v1240
      %1292 = vmatprep.subr.bf16.mxu0 0
      %1293 = vmatpush1.bf16.msra.mxu0 %v1239
      %1294 = vmatprep.subr.bf16.mxu0 0
      %1295 = vmatpush1.bf16.msra.mxu0 %v1238
      %1296 = vmatprep.subr.bf16.mxu0 0
      %1297 = vmatpush1.bf16.msra.mxu0 %v1237
      %1298 = vmatprep.subr.bf16.mxu0 0
      %1299 = vmatpush1.bf16.msra.mxu0 %v1236
      %1300 = vmatprep.subr.bf16.mxu0 0
      %1301 = vmatpush2.bf16.msra.mxu0 %v1251
      %1302 = vmatprep.subr.bf16.mxu0 0
      %1303 = vmatpush2.bf16.msra.mxu0 %v1250
      %1304 = vmatprep.subr.bf16.mxu0 0
      %1305 = vmatpush2.bf16.msra.mxu0 %v1249
      %1306 = vmatprep.subr.bf16.mxu0 0
      %1307 = vmatpush2.bf16.msra.mxu0 %v1248
      %1308 = vmatprep.subr.bf16.mxu0 0
      %1309 = vmatpush2.bf16.msra.mxu0 %v1247
      %1310 = vmatprep.subr.bf16.mxu0 0
      %1311 = vmatpush2.bf16.msra.mxu0 %v1246
      %1312 = vmatprep.subr.bf16.mxu0 0
      %1313 = vmatpush2.bf16.msra.mxu0 %v1245
      %1314 = vmatprep.subr.bf16.mxu0 0
      %1315 = vmatpush2.bf16.msra.mxu0 %v1244
      %1316 = vmatprep.mubr.bf16.mxu0 %v1117
      %1317 = vmatmul.mubr.bf16.gmra.mxu0 %v1116
      %v1318 = vpop.f32.mrf.mxu0
      %v1319 = vadd.f32 0.0, %v1318
      %v1320 = vpop.f32.mrf.mxu0
      %v1321 = vpop.f32.mrf.mxu0
      %v1322 = vadd.f32 0.0, %v1321
      %v1323 = vpop.f32.mrf.mxu0
      %1324 = vmatprep.mubr.bf16.mxu0 %v1120
      %1325 = vmatmul.mubr.bf16.gmra.mxu0 %v1119
      %v1326 = vpop.f32.mrf.mxu0
      %v1327 = vadd.f32 0.0, %v1326
      %v1328 = vpop.f32.mrf.mxu0
      %v1329 = vpop.f32.mrf.mxu0
      %v1330 = vadd.f32 0.0, %v1329
      %v1331 = vpop.f32.mrf.mxu0
      %1332 = vmatprep.mubr.bf16.mxu0 %v1123
      %1333 = vmatmul.mubr.bf16.gmra.mxu0 %v1122
      %v1334 = vpop.f32.mrf.mxu0
      %v1335 = vadd.f32 0.0, %v1334
      %v1336 = vpop.f32.mrf.mxu0
      %v1337 = vpop.f32.mrf.mxu0
      %v1338 = vadd.f32 0.0, %v1337
      %v1339 = vpop.f32.mrf.mxu0
      %1340 = vmatprep.mubr.bf16.mxu0 %v1126
      %1341 = vmatmul.mubr.bf16.gmra.mxu0 %v1125
      %v1342 = vpop.f32.mrf.mxu0
      %v1343 = vadd.f32 0.0, %v1342
      %v1344 = vpop.f32.mrf.mxu0
      %v1345 = vpop.f32.mrf.mxu0
      %v1346 = vadd.f32 0.0, %v1345
      %v1347 = vpop.f32.mrf.mxu0
      %1348 = vdwg.mxu0
      %1349 = vmatprep.subr.bf16.mxu0 0
      %1350 = vmatpush1.bf16.msra.mxu0 %v1259
      %1351 = vmatprep.subr.bf16.mxu0 0
      %1352 = vmatpush1.bf16.msra.mxu0 %v1258
      %1353 = vmatprep.subr.bf16.mxu0 0
      %1354 = vmatpush1.bf16.msra.mxu0 %v1257
      %1355 = vmatprep.subr.bf16.mxu0 0
      %1356 = vmatpush1.bf16.msra.mxu0 %v1256
      %1357 = vmatprep.subr.bf16.mxu0 0
      %1358 = vmatpush1.bf16.msra.mxu0 %v1255
      %1359 = vmatprep.subr.bf16.mxu0 0
      %1360 = vmatpush1.bf16.msra.mxu0 %v1254
      %1361 = vmatprep.subr.bf16.mxu0 0
      %1362 = vmatpush1.bf16.msra.mxu0 %v1253
      %1363 = vmatprep.subr.bf16.mxu0 0
      %1364 = vmatpush1.bf16.msra.mxu0 %v1252
      %1365 = vmatprep.subr.bf16.mxu0 0
      %1366 = vmatpush2.bf16.msra.mxu0 0
      %1367 = vmatprep.subr.bf16.mxu0 0
      %1368 = vmatpush2.bf16.msra.mxu0 0
      %1369 = vmatprep.subr.bf16.mxu0 0
      %1370 = vmatpush2.bf16.msra.mxu0 0
      %1371 = vmatprep.subr.bf16.mxu0 0
      %1372 = vmatpush2.bf16.msra.mxu0 0
      %1373 = vmatprep.subr.bf16.mxu0 0
      %1374 = vmatpush2.bf16.msra.mxu0 0
      %1375 = vmatprep.subr.bf16.mxu0 0
      %1376 = vmatpush2.bf16.msra.mxu0 0
      %1377 = vmatprep.subr.bf16.mxu0 0
      %1378 = vmatpush2.bf16.msra.mxu0 0
      %1379 = vmatprep.subr.bf16.mxu0 0
      %1380 = vmatpush2.bf16.msra.mxu0 0
      %1381 = vmatprep.mubr.bf16.mxu0 0
      %1382 = vmatmul.mubr.bf16.gmra.mxu0 %v1118
      %v1383 = vpop.f32.mrf.mxu0
      %v1384 = vadd.f32 %v1319, %v1383
      %v1385 = vpop.f32.mrf.mxu0
      %v1386 = vpop.f32.mrf.mxu0
      %v1387 = vadd.f32 %v1322, %v1386
      %v1388 = vpop.f32.mrf.mxu0
      %1389 = vmatprep.mubr.bf16.mxu0 0
      %1390 = vmatmul.mubr.bf16.gmra.mxu0 %v1121
      %v1391 = vpop.f32.mrf.mxu0
      %v1392 = vadd.f32 %v1327, %v1391
      %v1393 = vpop.f32.mrf.mxu0
      %v1394 = vpop.f32.mrf.mxu0
      %v1395 = vadd.f32 %v1330, %v1394
      %v1396 = vpop.f32.mrf.mxu0
      %1397 = vmatprep.mubr.bf16.mxu0 0
      %1398 = vmatmul.mubr.bf16.gmra.mxu0 %v1124
      %v1399 = vpop.f32.mrf.mxu0
      %v1400 = vadd.f32 %v1335, %v1399
      %v1401 = vpop.f32.mrf.mxu0
      %v1402 = vpop.f32.mrf.mxu0
      %v1403 = vadd.f32 %v1338, %v1402
      %v1404 = vpop.f32.mrf.mxu0
      %1405 = vmatprep.mubr.bf16.mxu0 0
      %1406 = vmatmul.mubr.bf16.gmra.mxu0 %v1127
      %v1407 = vpop.f32.mrf.mxu0
      %v1408 = vadd.f32 %v1343, %v1407
      %v1409 = vpop.f32.mrf.mxu0
      %v1410 = vpop.f32.mrf.mxu0
      %v1411 = vadd.f32 %v1346, %v1410
      %v1412 = vpop.f32.mrf.mxu0
      %1413 = vdwg.mxu0
      %v1416 = vunpack.c.l.b16 %v961
      %v1417 = vunpack.c.h.b16 %v961
      %v1418 = vunpack.c.l.b16 %v962
      %v1419 = vpack.c.b16 %v1092, %v1416
      %v1420 = vpack.c.b16 %v1093, %v1417
      %v1421 = vpack.c.b16 %v1094, %v1418
      %v1422 = vpack.c.b16 %v1098, %v1095
      %v1423 = vpack.c.b16 %v1099, %v1096
      %v1424 = vpack.c.b16 %v1100, %v1097
      %v1425 = vpack.c.b16 %v1104, %v1101
      %v1426 = vpack.c.b16 %v1105, %v1102
      %v1427 = vpack.c.b16 %v1106, %v1103
      %v1428 = vpack.c.b16 %v1110, %v1107
      %v1429 = vpack.c.b16 %v1111, %v1108
      %v1430 = vpack.c.b16 %v1112, %v1109
      %v1491 = vunpack.c.l.b16 %v977
      %v1492 = vunpack.c.l.b16 %v978
      %v1493 = vunpack.c.l.b16 %v979
      %v1494 = vunpack.c.l.b16 %v980
      %v1495 = vunpack.c.l.b16 %v981
      %v1496 = vunpack.c.l.b16 %v982
      %v1497 = vunpack.c.l.b16 %v983
      %v1498 = vunpack.c.l.b16 %v984
      %v1499 = vunpack.c.l.b16 %v985
      %v1500 = vunpack.c.l.b16 %v986
      %v1501 = vunpack.c.l.b16 %v987
      %v1502 = vunpack.c.l.b16 %v988
      %v1503 = vunpack.c.l.b16 %v989
      %v1504 = vunpack.c.l.b16 %v990
      %v1505 = vunpack.c.l.b16 %v991
      %v1506 = vunpack.c.l.b16 %v992
      %v1507 = vunpack.c.l.b16 %v993
      %v1508 = vunpack.c.l.b16 %v994
      %v1509 = vunpack.c.l.b16 %v995
      %v1510 = vunpack.c.l.b16 %v996
      %v1511 = vunpack.c.l.b16 %v997
      %v1512 = vunpack.c.l.b16 %v998
      %v1513 = vunpack.c.l.b16 %v999
      %v1514 = vunpack.c.l.b16 %v1000
      %v1515 = vunpack.c.l.b16 %v1001
      %v1516 = vunpack.c.l.b16 %v1002
      %v1517 = vunpack.c.l.b16 %v1003
      %v1518 = vunpack.c.l.b16 %v1004
      %v1519 = vunpack.c.l.b16 %v1005
      %v1520 = vunpack.c.l.b16 %v1006
      %v1521 = vunpack.c.l.b16 %v1007
      %v1522 = vunpack.c.l.b16 %v1008
      %v1523 = vunpack.c.l.b16 %v1009
      %v1524 = vunpack.c.l.b16 %v1010
      %v1525 = vunpack.c.l.b16 %v1011
      %v1526 = vunpack.c.l.b16 %v1012
      %v1527 = vunpack.c.l.b16 %v1013
      %v1528 = vunpack.c.l.b16 %v1014
      %v1529 = vunpack.c.l.b16 %v1015
      %v1530 = vunpack.c.l.b16 %v1016
      %v1531 = vunpack.c.l.b16 %v1017
      %v1532 = vunpack.c.l.b16 %v1018
      %v1533 = vunpack.c.l.b16 %v1019
      %v1534 = vunpack.c.l.b16 %v1020
      %v1535 = vunpack.c.l.b16 %v1021
      %v1536 = vunpack.c.l.b16 %v1022
      %v1537 = vunpack.c.l.b16 %v1023
      %v1538 = vunpack.c.l.b16 %v1024
      %v1539 = vpack.c.b16 %v1492, %v1491
      %v1540 = vpack.c.b16 %v1494, %v1493
      %v1541 = vpack.c.b16 %v1496, %v1495
      %v1542 = vpack.c.b16 %v1498, %v1497
      %v1543 = vpack.c.b16 %v1500, %v1499
      %v1544 = vpack.c.b16 %v1502, %v1501
      %v1545 = vpack.c.b16 %v1504, %v1503
      %v1546 = vpack.c.b16 %v1506, %v1505
      %v1547 = vpack.c.b16 %v1508, %v1507
      %v1548 = vpack.c.b16 %v1510, %v1509
      %v1549 = vpack.c.b16 %v1512, %v1511
      %v1550 = vpack.c.b16 %v1514, %v1513
      %v1551 = vpack.c.b16 %v1516, %v1515
      %v1552 = vpack.c.b16 %v1518, %v1517
      %v1553 = vpack.c.b16 %v1520, %v1519
      %v1554 = vpack.c.b16 %v1522, %v1521
      %v1555 = vpack.c.b16 %v1524, %v1523
      %v1556 = vpack.c.b16 %v1526, %v1525
      %v1557 = vpack.c.b16 %v1528, %v1527
      %v1558 = vpack.c.b16 %v1530, %v1529
      %v1559 = vpack.c.b16 %v1532, %v1531
      %v1560 = vpack.c.b16 %v1534, %v1533
      %v1561 = vpack.c.b16 %v1536, %v1535
      %v1562 = vpack.c.b16 %v1538, %v1537
      %1587 = vmatprep.subr.bf16.mxu0 0
      %1588 = vmatpush1.bf16.msra.mxu0 %v1546
      %1589 = vmatprep.subr.bf16.mxu0 0
      %1590 = vmatpush1.bf16.msra.mxu0 %v1545
      %1591 = vmatprep.subr.bf16.mxu0 0
      %1592 = vmatpush1.bf16.msra.mxu0 %v1544
      %1593 = vmatprep.subr.bf16.mxu0 0
      %1594 = vmatpush1.bf16.msra.mxu0 %v1543
      %1595 = vmatprep.subr.bf16.mxu0 0
      %1596 = vmatpush1.bf16.msra.mxu0 %v1542
      %1597 = vmatprep.subr.bf16.mxu0 0
      %1598 = vmatpush1.bf16.msra.mxu0 %v1541
      %1599 = vmatprep.subr.bf16.mxu0 0
      %1600 = vmatpush1.bf16.msra.mxu0 %v1540
      %1601 = vmatprep.subr.bf16.mxu0 0
      %1602 = vmatpush1.bf16.msra.mxu0 %v1539
      %1603 = vmatprep.subr.bf16.mxu0 0
      %1604 = vmatpush2.bf16.msra.mxu0 %v1554
      %1605 = vmatprep.subr.bf16.mxu0 0
      %1606 = vmatpush2.bf16.msra.mxu0 %v1553
      %1607 = vmatprep.subr.bf16.mxu0 0
      %1608 = vmatpush2.bf16.msra.mxu0 %v1552
      %1609 = vmatprep.subr.bf16.mxu0 0
      %1610 = vmatpush2.bf16.msra.mxu0 %v1551
      %1611 = vmatprep.subr.bf16.mxu0 0
      %1612 = vmatpush2.bf16.msra.mxu0 %v1550
      %1613 = vmatprep.subr.bf16.mxu0 0
      %1614 = vmatpush2.bf16.msra.mxu0 %v1549
      %1615 = vmatprep.subr.bf16.mxu0 0
      %1616 = vmatpush2.bf16.msra.mxu0 %v1548
      %1617 = vmatprep.subr.bf16.mxu0 0
      %1618 = vmatpush2.bf16.msra.mxu0 %v1547
      %1619 = vmatprep.mubr.bf16.mxu0 %v1420
      %1620 = vmatmul.mubr.bf16.gmra.mxu0 %v1419
      %v1621 = vpop.f32.mrf.mxu0
      %v1622 = vadd.f32 %v1384, %v1621
      %v1623 = vpop.f32.mrf.mxu0
      %v1624 = vpop.f32.mrf.mxu0
      %v1625 = vadd.f32 %v1387, %v1624
      %v1626 = vpop.f32.mrf.mxu0
      %1627 = vmatprep.mubr.bf16.mxu0 %v1423
      %1628 = vmatmul.mubr.bf16.gmra.mxu0 %v1422
      %v1629 = vpop.f32.mrf.mxu0
      %v1630 = vadd.f32 %v1392, %v1629
      %v1631 = vpop.f32.mrf.mxu0
      %v1632 = vpop.f32.mrf.mxu0
      %v1633 = vadd.f32 %v1395, %v1632
      %v1634 = vpop.f32.mrf.mxu0
      %1635 = vmatprep.mubr.bf16.mxu0 %v1426
      %1636 = vmatmul.mubr.bf16.gmra.mxu0 %v1425
      %v1637 = vpop.f32.mrf.mxu0
      %v1638 = vadd.f32 %v1400, %v1637
      %v1639 = vpop.f32.mrf.mxu0
      %v1640 = vpop.f32.mrf.mxu0
      %v1641 = vadd.f32 %v1403, %v1640
      %v1642 = vpop.f32.mrf.mxu0
      %1643 = vmatprep.mubr.bf16.mxu0 %v1429
      %1644 = vmatmul.mubr.bf16.gmra.mxu0 %v1428
      %v1645 = vpop.f32.mrf.mxu0
      %v1646 = vadd.f32 %v1408, %v1645
      %v1647 = vpop.f32.mrf.mxu0
      %v1648 = vpop.f32.mrf.mxu0
      %v1649 = vadd.f32 %v1411, %v1648
      %v1650 = vpop.f32.mrf.mxu0
      %1651 = vdwg.mxu0
      %1652 = vmatprep.subr.bf16.mxu0 0
      %1653 = vmatpush1.bf16.msra.mxu0 %v1562
      %1654 = vmatprep.subr.bf16.mxu0 0
      %1655 = vmatpush1.bf16.msra.mxu0 %v1561
      %1656 = vmatprep.subr.bf16.mxu0 0
      %1657 = vmatpush1.bf16.msra.mxu0 %v1560
      %1658 = vmatprep.subr.bf16.mxu0 0
      %1659 = vmatpush1.bf16.msra.mxu0 %v1559
      %1660 = vmatprep.subr.bf16.mxu0 0
      %1661 = vmatpush1.bf16.msra.mxu0 %v1558
      %1662 = vmatprep.subr.bf16.mxu0 0
      %1663 = vmatpush1.bf16.msra.mxu0 %v1557
      %1664 = vmatprep.subr.bf16.mxu0 0
      %1665 = vmatpush1.bf16.msra.mxu0 %v1556
      %1666 = vmatprep.subr.bf16.mxu0 0
      %1667 = vmatpush1.bf16.msra.mxu0 %v1555
      %1668 = vmatprep.subr.bf16.mxu0 0
      %1669 = vmatpush2.bf16.msra.mxu0 0
      %1670 = vmatprep.subr.bf16.mxu0 0
      %1671 = vmatpush2.bf16.msra.mxu0 0
      %1672 = vmatprep.subr.bf16.mxu0 0
      %1673 = vmatpush2.bf16.msra.mxu0 0
      %1674 = vmatprep.subr.bf16.mxu0 0
      %1675 = vmatpush2.bf16.msra.mxu0 0
      %1676 = vmatprep.subr.bf16.mxu0 0
      %1677 = vmatpush2.bf16.msra.mxu0 0
      %1678 = vmatprep.subr.bf16.mxu0 0
      %1679 = vmatpush2.bf16.msra.mxu0 0
      %1680 = vmatprep.subr.bf16.mxu0 0
      %1681 = vmatpush2.bf16.msra.mxu0 0
      %1682 = vmatprep.subr.bf16.mxu0 0
      %1683 = vmatpush2.bf16.msra.mxu0 0
      %1684 = vmatprep.mubr.bf16.mxu0 0
      %1685 = vmatmul.mubr.bf16.gmra.mxu0 %v1421
      %v1686 = vpop.f32.mrf.mxu0
      %v1687 = vadd.f32 %v1622, %v1686
      %v1688 = vpop.f32.mrf.mxu0
      %v1689 = vpop.f32.mrf.mxu0
      %v1690 = vadd.f32 %v1625, %v1689
      %v1691 = vpop.f32.mrf.mxu0
      %1692 = vmatprep.mubr.bf16.mxu0 0
      %1693 = vmatmul.mubr.bf16.gmra.mxu0 %v1424
      %v1694 = vpop.f32.mrf.mxu0
      %v1695 = vadd.f32 %v1630, %v1694
      %v1696 = vpop.f32.mrf.mxu0
      %v1697 = vpop.f32.mrf.mxu0
      %v1698 = vadd.f32 %v1633, %v1697
      %v1699 = vpop.f32.mrf.mxu0
      %1700 = vmatprep.mubr.bf16.mxu0 0
      %1701 = vmatmul.mubr.bf16.gmra.mxu0 %v1427
      %v1702 = vpop.f32.mrf.mxu0
      %v1703 = vadd.f32 %v1638, %v1702
      %v1704 = vpop.f32.mrf.mxu0
      %v1705 = vpop.f32.mrf.mxu0
      %v1706 = vadd.f32 %v1641, %v1705
      %v1707 = vpop.f32.mrf.mxu0
      %1708 = vmatprep.mubr.bf16.mxu0 0
      %1709 = vmatmul.mubr.bf16.gmra.mxu0 %v1430
      %v1710 = vpop.f32.mrf.mxu0
      %v1711 = vadd.f32 %v1646, %v1710
      %v1712 = vpop.f32.mrf.mxu0
      %v1713 = vpop.f32.mrf.mxu0
      %v1714 = vadd.f32 %v1649, %v1713
      %v1715 = vpop.f32.mrf.mxu0
      %1716 = vdwg.mxu0
      %v1717 = vld [vmem:[#allocation2 + $0x18] sm:$0xff]
      %v1718 = vld [vmem:[#allocation2 + $0x20] sm:$0xf]
      %v1719 = vld [vmem:[#allocation2 + $0x24] sm:$0xff]
      %v1720 = vld [vmem:[#allocation2 + $0x2c] sm:$0xf]
      %v1721 = vld [vmem:[#allocation2 + $0x30] sm:$0xff]
      %v1722 = vld [vmem:[#allocation2 + $0x38] sm:$0xf]
      %v1723 = vld [vmem:[#allocation2 + $0x3c] sm:$0xff]
      %v1724 = vld [vmem:[#allocation2 + $0x44] sm:$0xf]
      %v1725 = vld [vmem:[#allocation2 + $0x48] sm:$0xff]
      %v1726 = vld [vmem:[#allocation2 + $0x50] sm:$0xf]
      %v1727 = vld [vmem:[#allocation2 + $0x54] sm:$0xff]
      %v1728 = vld [vmem:[#allocation2 + $0x5c] sm:$0xf]
      %v1729 = vld [vmem:[#allocation2 + $0x60] sm:$0xff]
      %v1730 = vld [vmem:[#allocation2 + $0x68] sm:$0xf]
      %v1731 = vld [vmem:[#allocation2 + $0x6c] sm:$0xff]
      %v1732 = vld [vmem:[#allocation2 + $0x74] sm:$0xf]
      %s1733 = scalar_lea.vmem %s4, 384
      %v1734 = vld [vmem:[%s1733] sm:$0xf]
      %v1735 = vld [vmem:[%s1733 + $0x4] sm:$0xf]
      %v1736 = vld [vmem:[%s1733 + $0x8] sm:$0xf]
      %v1737 = vld [vmem:[%s1733 + $0xc] sm:$0xf]
      %v1738 = vld [vmem:[%s1733 + $0x10] sm:$0xf]
      %v1739 = vld [vmem:[%s1733 + $0x14] sm:$0xf]
      %v1740 = vld [vmem:[%s1733 + $0x18] sm:$0xf]
      %v1741 = vld [vmem:[%s1733 + $0x1c] sm:$0xf]
      %v1742 = vld [vmem:[%s1733 + $0x20] sm:$0xf]
      %v1743 = vld [vmem:[%s1733 + $0x24] sm:$0xf]
      %v1744 = vld [vmem:[%s1733 + $0x28] sm:$0xf]
      %v1745 = vld [vmem:[%s1733 + $0x2c] sm:$0xf]
      %v1746 = vld [vmem:[%s1733 + $0x30] sm:$0xf]
      %v1747 = vld [vmem:[%s1733 + $0x34] sm:$0xf]
      %v1748 = vld [vmem:[%s1733 + $0x38] sm:$0xf]
      %v1749 = vld [vmem:[%s1733 + $0x3c] sm:$0xf]
      %v1750 = vld [vmem:[%s1733 + $0x40] sm:$0xf]
      %v1751 = vld [vmem:[%s1733 + $0x44] sm:$0xf]
      %v1752 = vld [vmem:[%s1733 + $0x48] sm:$0xf]
      %v1753 = vld [vmem:[%s1733 + $0x4c] sm:$0xf]
      %v1754 = vld [vmem:[%s1733 + $0x50] sm:$0xf]
      %v1755 = vld [vmem:[%s1733 + $0x54] sm:$0xf]
      %v1756 = vld [vmem:[%s1733 + $0x58] sm:$0xf]
      %v1757 = vld [vmem:[%s1733 + $0x5c] sm:$0xf]
      %v1758 = vld [vmem:[%s1733 + $0x60] sm:$0xf]
      %v1759 = vld [vmem:[%s1733 + $0x64] sm:$0xf]
      %v1760 = vld [vmem:[%s1733 + $0x68] sm:$0xf]
      %v1761 = vld [vmem:[%s1733 + $0x6c] sm:$0xf]
      %v1762 = vld [vmem:[%s1733 + $0x70] sm:$0xf]
      %v1763 = vld [vmem:[%s1733 + $0x74] sm:$0xf]
      %v1764 = vld [vmem:[%s1733 + $0x78] sm:$0xf]
      %v1765 = vld [vmem:[%s1733 + $0x7c] sm:$0xf]
      %v1766 = vld [vmem:[%s1733 + $0x80] sm:$0xf]
      %v1767 = vld [vmem:[%s1733 + $0x84] sm:$0xf]
      %v1768 = vld [vmem:[%s1733 + $0x88] sm:$0xf]
      %v1769 = vld [vmem:[%s1733 + $0x8c] sm:$0xf]
      %v1770 = vld [vmem:[%s1733 + $0x90] sm:$0xf]
      %v1771 = vld [vmem:[%s1733 + $0x94] sm:$0xf]
      %v1772 = vld [vmem:[%s1733 + $0x98] sm:$0xf]
      %v1773 = vld [vmem:[%s1733 + $0x9c] sm:$0xf]
      %v1774 = vld [vmem:[%s1733 + $0xa0] sm:$0xf]
      %v1775 = vld [vmem:[%s1733 + $0xa4] sm:$0xf]
      %v1776 = vld [vmem:[%s1733 + $0xa8] sm:$0xf]
      %v1777 = vld [vmem:[%s1733 + $0xac] sm:$0xf]
      %v1778 = vld [vmem:[%s1733 + $0xb0] sm:$0xf]
      %v1779 = vld [vmem:[%s1733 + $0xb4] sm:$0xf]
      %v1780 = vld [vmem:[%s1733 + $0xb8] sm:$0xf]
      %v1781 = vld [vmem:[%s1733 + $0xbc] sm:$0xf]
      %v1798 = vunpack.c.l.b16 %v1717
      %v1799 = vunpack.c.h.b16 %v1717
      %v1800 = vunpack.c.l.b16 %v1718
      %v1801 = vunpack.c.l.b16 %v1719
      %v1802 = vunpack.c.h.b16 %v1719
      %v1803 = vunpack.c.l.b16 %v1720
      %v1804 = vunpack.c.l.b16 %v1721
      %v1805 = vunpack.c.h.b16 %v1721
      %v1806 = vunpack.c.l.b16 %v1722
      %v1807 = vunpack.c.l.b16 %v1723
      %v1808 = vunpack.c.h.b16 %v1723
      %v1809 = vunpack.c.l.b16 %v1724
      %v1810 = vunpack.c.l.b16 %v1725
      %v1811 = vunpack.c.h.b16 %v1725
      %v1812 = vunpack.c.l.b16 %v1726
      %v1813 = vunpack.c.l.b16 %v1727
      %v1814 = vunpack.c.h.b16 %v1727
      %v1815 = vunpack.c.l.b16 %v1728
      %v1816 = vunpack.c.l.b16 %v1729
      %v1817 = vunpack.c.h.b16 %v1729
      %v1818 = vunpack.c.l.b16 %v1730
      %v1819 = vunpack.c.l.b16 %v1731
      %v1820 = vunpack.c.h.b16 %v1731
      %v1821 = vunpack.c.l.b16 %v1732
      %v1822 = vpack.c.b16 %v1801, %v1798
      %v1823 = vpack.c.b16 %v1802, %v1799
      %v1824 = vpack.c.b16 %v1803, %v1800
      %v1825 = vpack.c.b16 %v1807, %v1804
      %v1826 = vpack.c.b16 %v1808, %v1805
      %v1827 = vpack.c.b16 %v1809, %v1806
      %v1828 = vpack.c.b16 %v1813, %v1810
      %v1829 = vpack.c.b16 %v1814, %v1811
      %v1830 = vpack.c.b16 %v1815, %v1812
      %v1831 = vpack.c.b16 %v1819, %v1816
      %v1832 = vpack.c.b16 %v1820, %v1817
      %v1833 = vpack.c.b16 %v1821, %v1818
      %v1894 = vunpack.c.l.b16 %v1734
      %v1895 = vunpack.c.l.b16 %v1735
      %v1896 = vunpack.c.l.b16 %v1736
      %v1897 = vunpack.c.l.b16 %v1737
      %v1898 = vunpack.c.l.b16 %v1738
      %v1899 = vunpack.c.l.b16 %v1739
      %v1900 = vunpack.c.l.b16 %v1740
      %v1901 = vunpack.c.l.b16 %v1741
      %v1902 = vunpack.c.l.b16 %v1742
      %v1903 = vunpack.c.l.b16 %v1743
      %v1904 = vunpack.c.l.b16 %v1744
      %v1905 = vunpack.c.l.b16 %v1745
      %v1906 = vunpack.c.l.b16 %v1746
      %v1907 = vunpack.c.l.b16 %v1747
      %v1908 = vunpack.c.l.b16 %v1748
      %v1909 = vunpack.c.l.b16 %v1749
      %v1910 = vunpack.c.l.b16 %v1750
      %v1911 = vunpack.c.l.b16 %v1751
      %v1912 = vunpack.c.l.b16 %v1752
      %v1913 = vunpack.c.l.b16 %v1753
      %v1914 = vunpack.c.l.b16 %v1754
      %v1915 = vunpack.c.l.b16 %v1755
      %v1916 = vunpack.c.l.b16 %v1756
      %v1917 = vunpack.c.l.b16 %v1757
      %v1918 = vunpack.c.l.b16 %v1758
      %v1919 = vunpack.c.l.b16 %v1759
      %v1920 = vunpack.c.l.b16 %v1760
      %v1921 = vunpack.c.l.b16 %v1761
      %v1922 = vunpack.c.l.b16 %v1762
      %v1923 = vunpack.c.l.b16 %v1763
      %v1924 = vunpack.c.l.b16 %v1764
      %v1925 = vunpack.c.l.b16 %v1765
      %v1926 = vunpack.c.l.b16 %v1766
      %v1927 = vunpack.c.l.b16 %v1767
      %v1928 = vunpack.c.l.b16 %v1768
      %v1929 = vunpack.c.l.b16 %v1769
      %v1930 = vunpack.c.l.b16 %v1770
      %v1931 = vunpack.c.l.b16 %v1771
      %v1932 = vunpack.c.l.b16 %v1772
      %v1933 = vunpack.c.l.b16 %v1773
      %v1934 = vunpack.c.l.b16 %v1774
      %v1935 = vunpack.c.l.b16 %v1775
      %v1936 = vunpack.c.l.b16 %v1776
      %v1937 = vunpack.c.l.b16 %v1777
      %v1938 = vunpack.c.l.b16 %v1778
      %v1939 = vunpack.c.l.b16 %v1779
      %v1940 = vunpack.c.l.b16 %v1780
      %v1941 = vunpack.c.l.b16 %v1781
      %v1942 = vpack.c.b16 %v1895, %v1894
      %v1943 = vpack.c.b16 %v1897, %v1896
      %v1944 = vpack.c.b16 %v1899, %v1898
      %v1945 = vpack.c.b16 %v1901, %v1900
      %v1946 = vpack.c.b16 %v1903, %v1902
      %v1947 = vpack.c.b16 %v1905, %v1904
      %v1948 = vpack.c.b16 %v1907, %v1906
      %v1949 = vpack.c.b16 %v1909, %v1908
      %v1950 = vpack.c.b16 %v1911, %v1910
      %v1951 = vpack.c.b16 %v1913, %v1912
      %v1952 = vpack.c.b16 %v1915, %v1914
      %v1953 = vpack.c.b16 %v1917, %v1916
      %v1954 = vpack.c.b16 %v1919, %v1918
      %v1955 = vpack.c.b16 %v1921, %v1920
      %v1956 = vpack.c.b16 %v1923, %v1922
      %v1957 = vpack.c.b16 %v1925, %v1924
      %v1958 = vpack.c.b16 %v1927, %v1926
      %v1959 = vpack.c.b16 %v1929, %v1928
      %v1960 = vpack.c.b16 %v1931, %v1930
      %v1961 = vpack.c.b16 %v1933, %v1932
      %v1962 = vpack.c.b16 %v1935, %v1934
      %v1963 = vpack.c.b16 %v1937, %v1936
      %v1964 = vpack.c.b16 %v1939, %v1938
      %v1965 = vpack.c.b16 %v1941, %v1940
      %1990 = vmatprep.subr.bf16.mxu0 0
      %1991 = vmatpush1.bf16.msra.mxu0 %v1949
      %1992 = vmatprep.subr.bf16.mxu0 0
      %1993 = vmatpush1.bf16.msra.mxu0 %v1948
      %1994 = vmatprep.subr.bf16.mxu0 0
      %1995 = vmatpush1.bf16.msra.mxu0 %v1947
      %1996 = vmatprep.subr.bf16.mxu0 0
      %1997 = vmatpush1.bf16.msra.mxu0 %v1946
      %1998 = vmatprep.subr.bf16.mxu0 0
      %1999 = vmatpush1.bf16.msra.mxu0 %v1945
      %2000 = vmatprep.subr.bf16.mxu0 0
      %2001 = vmatpush1.bf16.msra.mxu0 %v1944
      %2002 = vmatprep.subr.bf16.mxu0 0
      %2003 = vmatpush1.bf16.msra.mxu0 %v1943
      %2004 = vmatprep.subr.bf16.mxu0 0
      %2005 = vmatpush1.bf16.msra.mxu0 %v1942
      %2006 = vmatprep.subr.bf16.mxu0 0
      %2007 = vmatpush2.bf16.msra.mxu0 %v1957
      %2008 = vmatprep.subr.bf16.mxu0 0
      %2009 = vmatpush2.bf16.msra.mxu0 %v1956
      %2010 = vmatprep.subr.bf16.mxu0 0
      %2011 = vmatpush2.bf16.msra.mxu0 %v1955
      %2012 = vmatprep.subr.bf16.mxu0 0
      %2013 = vmatpush2.bf16.msra.mxu0 %v1954
      %2014 = vmatprep.subr.bf16.mxu0 0
      %2015 = vmatpush2.bf16.msra.mxu0 %v1953
      %2016 = vmatprep.subr.bf16.mxu0 0
      %2017 = vmatpush2.bf16.msra.mxu0 %v1952
      %2018 = vmatprep.subr.bf16.mxu0 0
      %2019 = vmatpush2.bf16.msra.mxu0 %v1951
      %2020 = vmatprep.subr.bf16.mxu0 0
      %2021 = vmatpush2.bf16.msra.mxu0 %v1950
      %2022 = vmatprep.mubr.bf16.mxu0 %v1823
      %2023 = vmatmul.mubr.bf16.gmra.mxu0 %v1822
      %v2024 = vpop.f32.mrf.mxu0
      %v2025 = vadd.f32 0.0, %v2024
      %v2026 = vpop.f32.mrf.mxu0
      %v2027 = vpop.f32.mrf.mxu0
      %v2028 = vadd.f32 0.0, %v2027
      %v2029 = vpop.f32.mrf.mxu0
      %2030 = vmatprep.mubr.bf16.mxu0 %v1826
      %2031 = vmatmul.mubr.bf16.gmra.mxu0 %v1825
      %v2032 = vpop.f32.mrf.mxu0
      %v2033 = vadd.f32 0.0, %v2032
      %v2034 = vpop.f32.mrf.mxu0
      %v2035 = vpop.f32.mrf.mxu0
      %v2036 = vadd.f32 0.0, %v2035
      %v2037 = vpop.f32.mrf.mxu0
      %2038 = vmatprep.mubr.bf16.mxu0 %v1829
      %2039 = vmatmul.mubr.bf16.gmra.mxu0 %v1828
      %v2040 = vpop.f32.mrf.mxu0
      %v2041 = vadd.f32 0.0, %v2040
      %v2042 = vpop.f32.mrf.mxu0
      %v2043 = vpop.f32.mrf.mxu0
      %v2044 = vadd.f32 0.0, %v2043
      %v2045 = vpop.f32.mrf.mxu0
      %2046 = vmatprep.mubr.bf16.mxu0 %v1832
      %2047 = vmatmul.mubr.bf16.gmra.mxu0 %v1831
      %v2048 = vpop.f32.mrf.mxu0
      %v2049 = vadd.f32 0.0, %v2048
      %v2050 = vpop.f32.mrf.mxu0
      %v2051 = vpop.f32.mrf.mxu0
      %v2052 = vadd.f32 0.0, %v2051
      %v2053 = vpop.f32.mrf.mxu0
      %2054 = vdwg.mxu0
      %2055 = vmatprep.subr.bf16.mxu0 0
      %2056 = vmatpush1.bf16.msra.mxu0 %v1965
      %2057 = vmatprep.subr.bf16.mxu0 0
      %2058 = vmatpush1.bf16.msra.mxu0 %v1964
      %2059 = vmatprep.subr.bf16.mxu0 0
      %2060 = vmatpush1.bf16.msra.mxu0 %v1963
      %2061 = vmatprep.subr.bf16.mxu0 0
      %2062 = vmatpush1.bf16.msra.mxu0 %v1962
      %2063 = vmatprep.subr.bf16.mxu0 0
      %2064 = vmatpush1.bf16.msra.mxu0 %v1961
      %2065 = vmatprep.subr.bf16.mxu0 0
      %2066 = vmatpush1.bf16.msra.mxu0 %v1960
      %2067 = vmatprep.subr.bf16.mxu0 0
      %2068 = vmatpush1.bf16.msra.mxu0 %v1959
      %2069 = vmatprep.subr.bf16.mxu0 0
      %2070 = vmatpush1.bf16.msra.mxu0 %v1958
      %2071 = vmatprep.subr.bf16.mxu0 0
      %2072 = vmatpush2.bf16.msra.mxu0 0
      %2073 = vmatprep.subr.bf16.mxu0 0
      %2074 = vmatpush2.bf16.msra.mxu0 0
      %2075 = vmatprep.subr.bf16.mxu0 0
      %2076 = vmatpush2.bf16.msra.mxu0 0
      %2077 = vmatprep.subr.bf16.mxu0 0
      %2078 = vmatpush2.bf16.msra.mxu0 0
      %2079 = vmatprep.subr.bf16.mxu0 0
      %2080 = vmatpush2.bf16.msra.mxu0 0
      %2081 = vmatprep.subr.bf16.mxu0 0
      %2082 = vmatpush2.bf16.msra.mxu0 0
      %2083 = vmatprep.subr.bf16.mxu0 0
      %2084 = vmatpush2.bf16.msra.mxu0 0
      %2085 = vmatprep.subr.bf16.mxu0 0
      %2086 = vmatpush2.bf16.msra.mxu0 0
      %2087 = vmatprep.mubr.bf16.mxu0 0
      %2088 = vmatmul.mubr.bf16.gmra.mxu0 %v1824
      %v2089 = vpop.f32.mrf.mxu0
      %v2090 = vadd.f32 %v2025, %v2089
      %v2091 = vpop.f32.mrf.mxu0
      %v2092 = vpop.f32.mrf.mxu0
      %v2093 = vadd.f32 %v2028, %v2092
      %v2094 = vpop.f32.mrf.mxu0
      %2095 = vmatprep.mubr.bf16.mxu0 0
      %2096 = vmatmul.mubr.bf16.gmra.mxu0 %v1827
      %v2097 = vpop.f32.mrf.mxu0
      %v2098 = vadd.f32 %v2033, %v2097
      %v2099 = vpop.f32.mrf.mxu0
      %v2100 = vpop.f32.mrf.mxu0
      %v2101 = vadd.f32 %v2036, %v2100
      %v2102 = vpop.f32.mrf.mxu0
      %2103 = vmatprep.mubr.bf16.mxu0 0
      %2104 = vmatmul.mubr.bf16.gmra.mxu0 %v1830
      %v2105 = vpop.f32.mrf.mxu0
      %v2106 = vadd.f32 %v2041, %v2105
      %v2107 = vpop.f32.mrf.mxu0
      %v2108 = vpop.f32.mrf.mxu0
      %v2109 = vadd.f32 %v2044, %v2108
      %v2110 = vpop.f32.mrf.mxu0
      %2111 = vmatprep.mubr.bf16.mxu0 0
      %2112 = vmatmul.mubr.bf16.gmra.mxu0 %v1833
      %v2113 = vpop.f32.mrf.mxu0
      %v2114 = vadd.f32 %v2049, %v2113
      %v2115 = vpop.f32.mrf.mxu0
      %v2116 = vpop.f32.mrf.mxu0
      %v2117 = vadd.f32 %v2052, %v2116
      %v2118 = vpop.f32.mrf.mxu0
      %2119 = vdwg.mxu0
      %v2120 = vadd.f32 %v1687, %v2090
      %v2121 = vadd.f32 %v1690, %v2093
      %v2122 = vadd.f32 %v1695, %v2098
      %v2123 = vadd.f32 %v1698, %v2101
      %v2124 = vadd.f32 %v1703, %v2106
      %v2125 = vadd.f32 %v1706, %v2109
      %v2126 = vadd.f32 %v1711, %v2114
      %v2127 = vadd.f32 %v1714, %v2117
      %v2128 = vld [vmem:[%s5] sm:$0x1]
      %v2130 = vlaneseq
      %v2131 = vshrl.u32 %v2130, 7
      %v2132 = vsub.s32 0, %v2131
      %v2133 = vrot.slane %v2128, %v2132
      %v2135 = vmul.f32 %v2120, %v2133
      %v2136 = vmul.f32 %v2121, %v2133
      %v2137 = vmul.f32 %v2122, %v2133
      %v2138 = vmul.f32 %v2123, %v2133
      %v2139 = vmul.f32 %v2124, %v2133
      %v2140 = vmul.f32 %v2125, %v2133
      %v2141 = vmul.f32 %v2126, %v2133
      %v2142 = vmul.f32 %v2127, %v2133
      %v2143 = vld [vmem:[%s6] sm:$0x1]
      %v2145 = vlaneseq
      %v2146 = vshrl.u32 %v2145, 7
      %v2147 = vsub.s32 0, %v2146
      %v2148 = vrot.slane %v2143, %v2147
      %v2150 = vadd.f32 %v2135, %v2148
      %v2151 = vadd.f32 %v2136, %v2148
      %v2152 = vadd.f32 %v2137, %v2148
      %v2153 = vadd.f32 %v2138, %v2148
      %v2154 = vadd.f32 %v2139, %v2148
      %v2155 = vadd.f32 %v2140, %v2148
      %v2156 = vadd.f32 %v2141, %v2148
      %v2157 = vadd.f32 %v2142, %v2148
      %v2158 = vld [vmem:[%s354 + $0x24] sm:$0xf]
      %v2159 = vld [vmem:[%s354 + $0x28] sm:$0xf]
      %v2160 = vld [vmem:[%s354 + $0x2c] sm:$0xf]
      %v2161 = vld [vmem:[%s354 + $0x30] sm:$0xf]
      %v2162 = vld [vmem:[%s354 + $0x34] sm:$0xf]
      %v2163 = vld [vmem:[%s354 + $0x38] sm:$0xf]
      %v2164 = vld [vmem:[%s354 + $0x3c] sm:$0xf]
      %v2165 = vld [vmem:[%s354 + $0x40] sm:$0xf]
      %v2166 = vld [vmem:[%s7] sm:$0xf]
      %v2167 = vld [vmem:[%s7 + $0x4] sm:$0xf]
      %v2168 = vld [vmem:[%s7 + $0x8] sm:$0xf]
      %v2177 = vunpack.c.l.b16 %v2158
      %v2178 = vunpack.c.l.b16 %v2159
      %v2179 = vunpack.c.l.b16 %v2160
      %v2180 = vunpack.c.l.b16 %v2161
      %v2181 = vunpack.c.l.b16 %v2162
      %v2182 = vunpack.c.l.b16 %v2163
      %v2183 = vunpack.c.l.b16 %v2164
      %v2184 = vunpack.c.l.b16 %v2165
      %v2185 = vpack.c.b16 %v2178, %v2177
      %v2186 = vpack.c.b16 %v2180, %v2179
      %v2187 = vpack.c.b16 %v2182, %v2181
      %v2188 = vpack.c.b16 %v2184, %v2183
      %v2192 = vunpack.c.l.b16 %v2166
      %v2193 = vunpack.c.l.b16 %v2167
      %v2194 = vunpack.c.l.b16 %v2168
      %v2195 = vpack.c.b16 %v2193, %v2192
      %v2196 = vpack.c.b16 %v2194, %v2194
      %v2199 = vsel %vm413, %v2185, 0
      %v2202 = vsel %vm413, %v2186, 0
      %v2205 = vsel %vm413, %v2187, 0
      %v2208 = vsel %vm413, %v2188, 0
      %v2211 = vsel %vm426, %v2196, 0
      %2213 = vmatprep.subr.bf16.mxu0 0
      %2214 = vmatpush1.bf16.msra.mxu0 0
      %2215 = vmatprep.subr.bf16.mxu0 0
      %2216 = vmatpush1.bf16.msra.mxu0 0
      %2217 = vmatprep.subr.bf16.mxu0 0
      %2218 = vmatpush1.bf16.msra.mxu0 0
      %2219 = vmatprep.subr.bf16.mxu0 0
      %2220 = vmatpush1.bf16.msra.mxu0 0
      %2221 = vmatprep.subr.bf16.mxu0 0
      %2222 = vmatpush1.bf16.msra.mxu0 0
      %2223 = vmatprep.subr.bf16.mxu0 0
      %2224 = vmatpush1.bf16.msra.mxu0 0
      %2225 = vmatprep.subr.bf16.mxu0 0
      %2226 = vmatpush1.bf16.msra.mxu0 %v2211
      %2227 = vmatprep.subr.bf16.mxu0 0
      %2228 = vmatpush1.bf16.msra.mxu0 %v2195
      %2229 = vmatprep.subr.bf16.mxu0 0
      %2230 = vmatpush2.bf16.msra.mxu0 0
      %2231 = vmatprep.subr.bf16.mxu0 0
      %2232 = vmatpush2.bf16.msra.mxu0 0
      %2233 = vmatprep.subr.bf16.mxu0 0
      %2234 = vmatpush2.bf16.msra.mxu0 0
      %2235 = vmatprep.subr.bf16.mxu0 0
      %2236 = vmatpush2.bf16.msra.mxu0 0
      %2237 = vmatprep.subr.bf16.mxu0 0
      %2238 = vmatpush2.bf16.msra.mxu0 0
      %2239 = vmatprep.subr.bf16.mxu0 0
      %2240 = vmatpush2.bf16.msra.mxu0 0
      %2241 = vmatprep.subr.bf16.mxu0 0
      %2242 = vmatpush2.bf16.msra.mxu0 0
      %2243 = vmatprep.subr.bf16.mxu0 0
      %2244 = vmatpush2.bf16.msra.mxu0 0
      %2245 = vmatprep.mubr.bf16.mxu0 0
      %2246 = vmatmul.mubr.bf16.gmra.mxu0 %v2199
      %v2247 = vpop.f32.mrf.mxu0
      %v2248 = vadd.f32 0.0, %v2247
      %v2249 = vpop.f32.mrf.mxu0
      %v2250 = vpop.f32.mrf.mxu0
      %v2251 = vadd.f32 0.0, %v2250
      %v2252 = vpop.f32.mrf.mxu0
      %2253 = vmatprep.mubr.bf16.mxu0 0
      %2254 = vmatmul.mubr.bf16.gmra.mxu0 %v2202
      %v2255 = vpop.f32.mrf.mxu0
      %v2256 = vadd.f32 0.0, %v2255
      %v2257 = vpop.f32.mrf.mxu0
      %v2258 = vpop.f32.mrf.mxu0
      %v2259 = vadd.f32 0.0, %v2258
      %v2260 = vpop.f32.mrf.mxu0
      %2261 = vmatprep.mubr.bf16.mxu0 0
      %2262 = vmatmul.mubr.bf16.gmra.mxu0 %v2205
      %v2263 = vpop.f32.mrf.mxu0
      %v2264 = vadd.f32 0.0, %v2263
      %v2265 = vpop.f32.mrf.mxu0
      %v2266 = vpop.f32.mrf.mxu0
      %v2267 = vadd.f32 0.0, %v2266
      %v2268 = vpop.f32.mrf.mxu0
      %2269 = vmatprep.mubr.bf16.mxu0 0
      %2270 = vmatmul.mubr.bf16.gmra.mxu0 %v2208
      %v2271 = vpop.f32.mrf.mxu0
      %v2272 = vadd.f32 0.0, %v2271
      %v2273 = vpop.f32.mrf.mxu0
      %v2274 = vpop.f32.mrf.mxu0
      %v2275 = vadd.f32 0.0, %v2274
      %v2276 = vpop.f32.mrf.mxu0
      %2277 = vdwg.mxu0
      %v2278 = vld [vmem:[%s8] sm:$0x1]
      %v2280 = vlaneseq
      %v2281 = vshrl.u32 %v2280, 7
      %v2282 = vsub.s32 0, %v2281
      %v2283 = vrot.slane %v2278, %v2282
      %v2285 = vmul.f32 %v2248, %v2283
      %v2286 = vmul.f32 %v2251, %v2283
      %v2287 = vmul.f32 %v2256, %v2283
      %v2288 = vmul.f32 %v2259, %v2283
      %v2289 = vmul.f32 %v2264, %v2283
      %v2290 = vmul.f32 %v2267, %v2283
      %v2291 = vmul.f32 %v2272, %v2283
      %v2292 = vmul.f32 %v2275, %v2283
      %v2293 = vld [vmem:[%s9] sm:$0x1]
      %v2295 = vlaneseq
      %v2296 = vshrl.u32 %v2295, 7
      %v2297 = vsub.s32 0, %v2296
      %v2298 = vrot.slane %v2293, %v2297
      %v2300 = vadd.f32 %v2285, %v2298
      %v2301 = vadd.f32 %v2286, %v2298
      %v2302 = vadd.f32 %v2287, %v2298
      %v2303 = vadd.f32 %v2288, %v2298
      %v2304 = vadd.f32 %v2289, %v2298
      %v2305 = vadd.f32 %v2290, %v2298
      %v2306 = vadd.f32 %v2291, %v2298
      %v2307 = vadd.f32 %v2292, %v2298
      %v2308 = vadd.f32 %v2150, %v2300
      %v2309 = vadd.f32 %v2151, %v2301
      %v2310 = vadd.f32 %v2152, %v2302
      %v2311 = vadd.f32 %v2153, %v2303
      %v2312 = vadd.f32 %v2154, %v2304
      %v2313 = vadd.f32 %v2155, %v2305
      %v2314 = vadd.f32 %v2156, %v2306
      %v2315 = vadd.f32 %v2157, %v2307
      %v2316 = vmul.f32 %v2308, 0.01
      %v2317 = vmul.f32 %v2309, 0.01
      %v2318 = vmul.f32 %v2310, 0.01
      %v2319 = vmul.f32 %v2311, 0.01
      %v2320 = vmul.f32 %v2312, 0.01
      %v2321 = vmul.f32 %v2313, 0.01
      %v2322 = vmul.f32 %v2314, 0.01
      %v2323 = vmul.f32 %v2315, 0.01
      %v2324 = vmax.f32 %v2308, %v2316
      %v2325 = vmax.f32 %v2309, %v2317
      %v2326 = vmax.f32 %v2310, %v2318
      %v2327 = vmax.f32 %v2311, %v2319
      %v2328 = vmax.f32 %v2312, %v2320
      %v2329 = vmax.f32 %v2313, %v2321
      %v2330 = vmax.f32 %v2314, %v2322
      %v2331 = vmax.f32 %v2315, %v2323
      %v2332 = vpack.c.bf16 %v2325, %v2324
      %v2333 = vpack.c.bf16 %v2327, %v2326
      %v2334 = vpack.c.bf16 %v2329, %v2328
      %v2335 = vpack.c.bf16 %v2331, %v2330
      %v2340 = vunpack.c.l.b16 %v2332
      %v2341 = vunpack.c.h.b16 %v2332
      %v2342 = vunpack.c.l.b16 %v2333
      %v2343 = vunpack.c.h.b16 %v2333
      %v2344 = vunpack.c.l.b16 %v2334
      %v2345 = vunpack.c.h.b16 %v2334
      %v2346 = vunpack.c.l.b16 %v2335
      %v2347 = vunpack.c.h.b16 %v2335
      %v2348 = vpack.c.b16 %v2340, %v2340
      %v2349 = vpack.c.b16 %v2341, %v2341
      %v2350 = vpack.c.b16 %v2342, %v2342
      %v2351 = vpack.c.b16 %v2343, %v2343
      %v2352 = vpack.c.b16 %v2344, %v2344
      %v2353 = vpack.c.b16 %v2345, %v2345
      %v2354 = vpack.c.b16 %v2346, %v2346
      %v2355 = vpack.c.b16 %v2347, %v2347
      %2364 = vst [vmem:[%s359] sm:$0xf] %v2348
      %2365 = vst [vmem:[%s359 + $0x4] sm:$0xf] %v2349
      %2366 = vst [vmem:[%s359 + $0x8] sm:$0xf] %v2350
      %2367 = vst [vmem:[%s359 + $0xc] sm:$0xf] %v2351
      %2368 = vst [vmem:[%s359 + $0x10] sm:$0xf] %v2352
      %2369 = vst [vmem:[%s359 + $0x14] sm:$0xf] %v2353
      %2370 = vst [vmem:[%s359 + $0x18] sm:$0xf] %v2354
      %2371 = vst [vmem:[%s359 + $0x1c] sm:$0xf] %v2355
      %p2372 = scmp.lt.s32.totalorder %s21, 1
      %s2373 = scalar_select %p2372, %s21, 1
      %s2374 = smul.addr %s2373, 8
      %s2375 = smul.addr %s2374, 4
      %s2376 = scalar_lea.vmem %s10, %s2375
      // Predicated region
      $region61: #{residual_block_2d.1} parent=59 // pred_check
        %p2377 = pneg %p254
      $region62: #{residual_block_2d.1} parent=59 // pred_check_branch
        %2379 = sbr.rel (%p2377) target = $region64
      $region63: #{residual_block_2d.1} parent=59 // pred_region
        _
      $region64: #{residual_block_2d.1} parent=59 // pred_fallthru
        _
    $region60: #{residual_block_2d.1} parent=5 // pred_fallthru
      _
    %p2380 = scmp.le.s32.totalorder 2, %s16
    // Predicated region
    $region65: #{residual_block_2d.1} parent=5 // pred_check
      %p2381 = pneg %p2380
    $region66: #{residual_block_2d.1} parent=5 // pred_check_branch
      %2383 = sbr.rel (%p2381) target = $region68
    $region67: #{residual_block_2d.1} parent=5 // pred_region
      %s2384 = ssub.s32 %s16, 2
      // Predicated region
      $region69: #{residual_block_2d.1} parent=67 // pred_check
        %p2385 = pneg %p260
      $region70: #{residual_block_2d.1} parent=67 // pred_check_branch
        %2387 = sbr.rel (%p2385) target = $region72
      $region71: #{residual_block_2d.1} parent=67 // pred_region
        %p2388 = scmp.lt.s32.totalorder %s22, 1
        %s2389 = scalar_select %p2388, %s22, 1
        %s2390 = smul.addr %s2389, 8
        %s2391 = smul.addr %s2390, 4
        %s2392 = scalar_lea.vmem %s10, %s2391
      $region72: #{residual_block_2d.1} parent=67 // pred_fallthru
        _
    $region68: #{residual_block_2d.1} parent=5 // pred_fallthru
      _
  $region6: #{residual_block_2d.1} parent=0 // loop_footer
    %s20 = sadd.s32 1, %s16
  $region7: #{residual_block_2d.1} parent=0 // loop_footer_branch
    %15 = sbr.rel target = $region3
  $region8: #{residual_block_2d.1} parent=0 // loop_exit
    _

</llo_original>
